<compile_context>
chip_gen: v6e
topology: v6e:2x2x1
jax: 0.10.0
libtpu: 0.0.40
codegen_flags: <defaults>
</compile_context>

<pallas_src>
import jax
import jax.numpy as jnp
from jax.experimental import pallas as pl
from jax.experimental.pallas import tpu as pltpu

C_IN = 3
C_OUT = 3
K = 3

# Slice-ReLU region (matches x[:, 1:2, 16:25, 8::2] in the PyTorch module).
RELU_CH = 1
ROW_LO, ROW_HI = 16, 25
COL_START, COL_STEP = 8, 2


def conv_slice_relu_kernel(x_ref, w_ref, b_ref, o_ref, xp_ref):
    # x_ref : VMEM (NB, C_IN, H, W)      raw (unpadded) input images
    # w_ref : SMEM (C_OUT*C_IN*K*K,)     flattened conv weights (scalar reads)
    # b_ref : SMEM (C_OUT,)              bias
    # o_ref : VMEM (NB, C_OUT, H, W)
    # xp_ref: VMEM (C_IN, H+2, W+2)      scratch: zero-padded copy of one image
    NB = x_ref.shape[0]
    H, W = o_ref.shape[2], o_ref.shape[3]

    # Hoist all scalar parameter reads (SMEM) out of the image/channel loops.
    bias = [b_ref[co] for co in range(C_OUT)]
    wgt = [[[[w_ref[((co * C_IN + ci) * K + kh) * K + kw]
              for kw in range(K)]
             for kh in range(K)]
            for ci in range(C_IN)]
           for co in range(C_OUT)]

    # Column mask for the strided slice-ReLU (cols 8::2), restricted to the
    # 9-row strip rows 16:25 of channel 1.  Hoisted: computed once per call.
    n_rows = ROW_HI - ROW_LO
    col = jax.lax.broadcasted_iota(jnp.int32, (n_rows, W), 1)
    col_mask = (col >= COL_START) & (((col - COL_START) % COL_STEP) == 0)

    # Zero the padded scratch once per kernel invocation; the 1-pixel halo is
    # never written by the per-image interior stores, so it stays zero.
    xp_ref[...] = jnp.zeros_like(xp_ref)

    # NB is tiny (<= batch); a fully static loop is fine.  For large NB switch
    # to lax.fori_loop(..., unroll=True) or an extra grid axis.
    for nb in range(NB):
        # In-kernel padding: write this image into the interior of the scratch.
        xp_ref[:, 1:H + 1, 1:W + 1] = x_ref[nb]

        # One accumulator per output channel, initialized with the bias.
        acc = [jnp.full((H, W), bias[co], dtype=jnp.float32)
               for co in range(C_OUT)]

        # cin-outer: load / shift each input channel ONCE, update all couts.
        for ci in range(C_IN):
            xc = xp_ref[ci]                                # (H+2, W+2)
            # Hoist the kw lane shifts: 3 lane-offset slabs per input channel,
            # reused by the 3 sublane (kh) taps below.
            xkw = [xc[:, kw:kw + W] for kw in range(K)]    # each (H+2, W)
            for kh in range(K):
                for kw in range(K):
                    win = xkw[kw][kh:kh + H, :]            # (H, W), lane-aligned
                    for co in range(C_OUT):
                        acc[co] = acc[co] + wgt[co][ci][kh][kw] * win

        # Store outputs; apply the in-place slice ReLU on channel 1 only over
        # the affected 9-row strip (rows 16:25, cols 8::2).
        for co in range(C_OUT):
            o_ref[nb, co] = acc[co].astype(o_ref.dtype)
        strip = acc[RELU_CH][ROW_LO:ROW_HI, :]
        strip = jnp.where(col_mask, jnp.maximum(strip, 0.0), strip)
        o_ref[nb, RELU_CH, ROW_LO:ROW_HI, :] = strip.astype(o_ref.dtype)


def _images_per_block(n):
    """Batch-block size: fold the batch on single-TC chips, split on multi-TC."""
    try:
        kind = jax.devices()[0].device_kind.lower()
    except Exception:
        return 1  # unknown backend: fall back to one image per grid step
    single_tc = any(t in kind for t in
                    ("v5e", "v5 lite", "v5lite", "v6e", "v6 lite", "v6lite"))
    if single_tc:
        # v5e / v6e: 1 TensorCore -> a grid step costs ~0.35us, more than the
        # per-image compute here, so fold the whole batch into one step.
        return n
    # v7x (2 TCs/chip) and others: one image per grid step so the "parallel"
    # grid axis shards images across TensorCores.
    return 1


def my_module_forward(x, w, b):
    """x: (N, 3, H, W) float32; w: (3, 3, 3, 3); b: (3,)."""
    N, C, H, W = x.shape
    assert C == C_IN
    assert H >= ROW_HI and W > COL_START  # hard-coded slice-ReLU region fits

    w_flat = w.reshape(-1).astype(jnp.float32)
    b = b.astype(jnp.float32)

    nb = _images_per_block(N)
    assert N % nb == 0
    grid = (N // nb,)

    # NOTE: full-spatial blocks are ~30 KB of VMEM at this size.  If H, W grow
    # toward ~1k, tile H (and W) with a 1-pixel halo instead of full-spatial
    # blocks; for larger N/W, pack images along the lane axis so stores are
    # lane-dense (multiple of 128 wide).
    return pl.pallas_call(
        conv_slice_relu_kernel,
        out_shape=jax.ShapeDtypeStruct((N, C_OUT, H, W), jnp.float32),
        grid=grid,
        in_specs=[
            pl.BlockSpec((nb, C_IN, H, W), lambda n: (n, 0, 0, 0)),
            pl.BlockSpec(memory_space=pltpu.MemorySpace.SMEM),
            pl.BlockSpec(memory_space=pltpu.MemorySpace.SMEM),
        ],
        out_specs=pl.BlockSpec((nb, C_OUT, H, W), lambda n: (n, 0, 0, 0)),
        scratch_shapes=[pltpu.VMEM((C_IN, H + 2, W + 2), jnp.float32)],
        compiler_params=pltpu.CompilerParams(
            dimension_semantics=("parallel",)),
    )(x, w_flat, b)


def _reference(x, w, b):
    # Pure-JAX reference: conv + slice relu
    y = jax.lax.conv_general_dilated(
        x, w, window_strides=(1, 1), padding=((1, 1), (1, 1)),
        dimension_numbers=("NCHW", "OIHW", "NCHW"))
    y = y + b.reshape(1, -1, 1, 1)
    sl = y[:, 1:2, ROW_LO:ROW_HI, COL_START::COL_STEP]
    y = y.at[:, 1:2, ROW_LO:ROW_HI, COL_START::COL_STEP].set(
        jnp.maximum(sl, 0.0))
    return y


if __name__ == "__main__":
    key = jax.random.PRNGKey(0)
    kx, kw, kb = jax.random.split(key, 3)

    # Small shapes consistent with the module: batch=2, C=3, spatial=32x32
    N, H, W = 2, 32, 32
    x = jax.random.normal(kx, (N, C_IN, H, W), dtype=jnp.float32)

    # Deterministic parameter init (Conv2d(3,3,kernel=3x3) shapes)
    fan_in = C_IN * K * K
    bound = 1.0 / (fan_in ** 0.5)
    w = jax.random.uniform(kw, (C_OUT, C_IN, K, K), jnp.float32, -bound, bound)
    b = jax.random.uniform(kb, (C_OUT,), jnp.float32, -bound, bound)

    out = my_module_forward(x, w, b)
    out = jax.block_until_ready(out)

    ref = _reference(x, w, b)
    assert out.shape == (N, C_OUT, H, W)
    assert jnp.allclose(out, ref, atol=1e-4, rtol=1e-4), "mismatch vs reference"

    print("KERNEL_OK")
</pallas_src>

<mosaic_0001>
module attributes {stable_mosaic.version = 11 : i64} {
  func.func @conv_slice_relu_kernel(%arg0: i32, %arg1: memref<1x3x32x32xf32, #tpu.memory_space<vmem>>, %arg2: memref<81xf32, #tpu.memory_space<smem>>, %arg3: memref<3xf32, #tpu.memory_space<smem>>, %arg4: memref<1x3x32x32xf32, #tpu.memory_space<vmem>>, %arg5: memref<3x34x34xf32, #tpu.memory_space<vmem>>) attributes {dimension_semantics = [#tpu.dimension_semantics<parallel>], iteration_bounds = array<i64: 2>, scalar_prefetch = 0 : i64, scratch_operands = 1 : i64, tpu.core_type = #tpu.core_type<tc>, window_params = [{transform_indices = @transform_0, window_bounds = array<i64: 1, 3, 32, 32>}, {transform_indices = @transform_1, window_bounds = array<i64: 81>}, {transform_indices = @transform_2, window_bounds = array<i64: 3>}, {transform_indices = @transform_3, window_bounds = array<i64: 1, 3, 32, 32>}]} {
    %c0 = arith.constant 0 : index
    %0 = memref.load %arg3[%c0] : memref<3xf32, #tpu.memory_space<smem>>
    %c1 = arith.constant 1 : index
    %1 = memref.load %arg3[%c1] : memref<3xf32, #tpu.memory_space<smem>>
    %c2 = arith.constant 2 : index
    %2 = memref.load %arg3[%c2] : memref<3xf32, #tpu.memory_space<smem>>
    %c0_0 = arith.constant 0 : index
    %3 = memref.load %arg2[%c0_0] : memref<81xf32, #tpu.memory_space<smem>>
    %c1_1 = arith.constant 1 : index
    %4 = memref.load %arg2[%c1_1] : memref<81xf32, #tpu.memory_space<smem>>
    %c2_2 = arith.constant 2 : index
    %5 = memref.load %arg2[%c2_2] : memref<81xf32, #tpu.memory_space<smem>>
    %c3 = arith.constant 3 : index
    %6 = memref.load %arg2[%c3] : memref<81xf32, #tpu.memory_space<smem>>
    %c4 = arith.constant 4 : index
    %7 = memref.load %arg2[%c4] : memref<81xf32, #tpu.memory_space<smem>>
    %c5 = arith.constant 5 : index
    %8 = memref.load %arg2[%c5] : memref<81xf32, #tpu.memory_space<smem>>
    %c6 = arith.constant 6 : index
    %9 = memref.load %arg2[%c6] : memref<81xf32, #tpu.memory_space<smem>>
    %c7 = arith.constant 7 : index
    %10 = memref.load %arg2[%c7] : memref<81xf32, #tpu.memory_space<smem>>
    %c8 = arith.constant 8 : index
    %11 = memref.load %arg2[%c8] : memref<81xf32, #tpu.memory_space<smem>>
    %c9 = arith.constant 9 : index
    %12 = memref.load %arg2[%c9] : memref<81xf32, #tpu.memory_space<smem>>
    %c10 = arith.constant 10 : index
    %13 = memref.load %arg2[%c10] : memref<81xf32, #tpu.memory_space<smem>>
    %c11 = arith.constant 11 : index
    %14 = memref.load %arg2[%c11] : memref<81xf32, #tpu.memory_space<smem>>
    %c12 = arith.constant 12 : index
    %15 = memref.load %arg2[%c12] : memref<81xf32, #tpu.memory_space<smem>>
    %c13 = arith.constant 13 : index
    %16 = memref.load %arg2[%c13] : memref<81xf32, #tpu.memory_space<smem>>
    %c14 = arith.constant 14 : index
    %17 = memref.load %arg2[%c14] : memref<81xf32, #tpu.memory_space<smem>>
    %c15 = arith.constant 15 : index
    %18 = memref.load %arg2[%c15] : memref<81xf32, #tpu.memory_space<smem>>
    %c16 = arith.constant 16 : index
    %19 = memref.load %arg2[%c16] : memref<81xf32, #tpu.memory_space<smem>>
    %c17 = arith.constant 17 : index
    %20 = memref.load %arg2[%c17] : memref<81xf32, #tpu.memory_space<smem>>
    %c18 = arith.constant 18 : index
    %21 = memref.load %arg2[%c18] : memref<81xf32, #tpu.memory_space<smem>>
    %c19 = arith.constant 19 : index
    %22 = memref.load %arg2[%c19] : memref<81xf32, #tpu.memory_space<smem>>
    %c20 = arith.constant 20 : index
    %23 = memref.load %arg2[%c20] : memref<81xf32, #tpu.memory_space<smem>>
    %c21 = arith.constant 21 : index
    %24 = memref.load %arg2[%c21] : memref<81xf32, #tpu.memory_space<smem>>
    %c22 = arith.constant 22 : index
    %25 = memref.load %arg2[%c22] : memref<81xf32, #tpu.memory_space<smem>>
    %c23 = arith.constant 23 : index
    %26 = memref.load %arg2[%c23] : memref<81xf32, #tpu.memory_space<smem>>
    %c24 = arith.constant 24 : index
    %27 = memref.load %arg2[%c24] : memref<81xf32, #tpu.memory_space<smem>>
    %c25 = arith.constant 25 : index
    %28 = memref.load %arg2[%c25] : memref<81xf32, #tpu.memory_space<smem>>
    %c26 = arith.constant 26 : index
    %29 = memref.load %arg2[%c26] : memref<81xf32, #tpu.memory_space<smem>>
    %c27 = arith.constant 27 : index
    %30 = memref.load %arg2[%c27] : memref<81xf32, #tpu.memory_space<smem>>
    %c28 = arith.constant 28 : index
    %31 = memref.load %arg2[%c28] : memref<81xf32, #tpu.memory_space<smem>>
    %c29 = arith.constant 29 : index
    %32 = memref.load %arg2[%c29] : memref<81xf32, #tpu.memory_space<smem>>
    %c30 = arith.constant 30 : index
    %33 = memref.load %arg2[%c30] : memref<81xf32, #tpu.memory_space<smem>>
    %c31 = arith.constant 31 : index
    %34 = memref.load %arg2[%c31] : memref<81xf32, #tpu.memory_space<smem>>
    %c32 = arith.constant 32 : index
    %35 = memref.load %arg2[%c32] : memref<81xf32, #tpu.memory_space<smem>>
    %c33 = arith.constant 33 : index
    %36 = memref.load %arg2[%c33] : memref<81xf32, #tpu.memory_space<smem>>
    %c34 = arith.constant 34 : index
    %37 = memref.load %arg2[%c34] : memref<81xf32, #tpu.memory_space<smem>>
    %c35 = arith.constant 35 : index
    %38 = memref.load %arg2[%c35] : memref<81xf32, #tpu.memory_space<smem>>
    %c36 = arith.constant 36 : index
    %39 = memref.load %arg2[%c36] : memref<81xf32, #tpu.memory_space<smem>>
    %c37 = arith.constant 37 : index
    %40 = memref.load %arg2[%c37] : memref<81xf32, #tpu.memory_space<smem>>
    %c38 = arith.constant 38 : index
    %41 = memref.load %arg2[%c38] : memref<81xf32, #tpu.memory_space<smem>>
    %c39 = arith.constant 39 : index
    %42 = memref.load %arg2[%c39] : memref<81xf32, #tpu.memory_space<smem>>
    %c40 = arith.constant 40 : index
    %43 = memref.load %arg2[%c40] : memref<81xf32, #tpu.memory_space<smem>>
    %c41 = arith.constant 41 : index
    %44 = memref.load %arg2[%c41] : memref<81xf32, #tpu.memory_space<smem>>
    %c42 = arith.constant 42 : index
    %45 = memref.load %arg2[%c42] : memref<81xf32, #tpu.memory_space<smem>>
    %c43 = arith.constant 43 : index
    %46 = memref.load %arg2[%c43] : memref<81xf32, #tpu.memory_space<smem>>
    %c44 = arith.constant 44 : index
    %47 = memref.load %arg2[%c44] : memref<81xf32, #tpu.memory_space<smem>>
    %c45 = arith.constant 45 : index
    %48 = memref.load %arg2[%c45] : memref<81xf32, #tpu.memory_space<smem>>
    %c46 = arith.constant 46 : index
    %49 = memref.load %arg2[%c46] : memref<81xf32, #tpu.memory_space<smem>>
    %c47 = arith.constant 47 : index
    %50 = memref.load %arg2[%c47] : memref<81xf32, #tpu.memory_space<smem>>
    %c48 = arith.constant 48 : index
    %51 = memref.load %arg2[%c48] : memref<81xf32, #tpu.memory_space<smem>>
    %c49 = arith.constant 49 : index
    %52 = memref.load %arg2[%c49] : memref<81xf32, #tpu.memory_space<smem>>
    %c50 = arith.constant 50 : index
    %53 = memref.load %arg2[%c50] : memref<81xf32, #tpu.memory_space<smem>>
    %c51 = arith.constant 51 : index
    %54 = memref.load %arg2[%c51] : memref<81xf32, #tpu.memory_space<smem>>
    %c52 = arith.constant 52 : index
    %55 = memref.load %arg2[%c52] : memref<81xf32, #tpu.memory_space<smem>>
    %c53 = arith.constant 53 : index
    %56 = memref.load %arg2[%c53] : memref<81xf32, #tpu.memory_space<smem>>
    %c54 = arith.constant 54 : index
    %57 = memref.load %arg2[%c54] : memref<81xf32, #tpu.memory_space<smem>>
    %c55 = arith.constant 55 : index
    %58 = memref.load %arg2[%c55] : memref<81xf32, #tpu.memory_space<smem>>
    %c56 = arith.constant 56 : index
    %59 = memref.load %arg2[%c56] : memref<81xf32, #tpu.memory_space<smem>>
    %c57 = arith.constant 57 : index
    %60 = memref.load %arg2[%c57] : memref<81xf32, #tpu.memory_space<smem>>
    %c58 = arith.constant 58 : index
    %61 = memref.load %arg2[%c58] : memref<81xf32, #tpu.memory_space<smem>>
    %c59 = arith.constant 59 : index
    %62 = memref.load %arg2[%c59] : memref<81xf32, #tpu.memory_space<smem>>
    %c60 = arith.constant 60 : index
    %63 = memref.load %arg2[%c60] : memref<81xf32, #tpu.memory_space<smem>>
    %c61 = arith.constant 61 : index
    %64 = memref.load %arg2[%c61] : memref<81xf32, #tpu.memory_space<smem>>
    %c62 = arith.constant 62 : index
    %65 = memref.load %arg2[%c62] : memref<81xf32, #tpu.memory_space<smem>>
    %c63 = arith.constant 63 : index
    %66 = memref.load %arg2[%c63] : memref<81xf32, #tpu.memory_space<smem>>
    %c64 = arith.constant 64 : index
    %67 = memref.load %arg2[%c64] : memref<81xf32, #tpu.memory_space<smem>>
    %c65 = arith.constant 65 : index
    %68 = memref.load %arg2[%c65] : memref<81xf32, #tpu.memory_space<smem>>
    %c66 = arith.constant 66 : index
    %69 = memref.load %arg2[%c66] : memref<81xf32, #tpu.memory_space<smem>>
    %c67 = arith.constant 67 : index
    %70 = memref.load %arg2[%c67] : memref<81xf32, #tpu.memory_space<smem>>
    %c68 = arith.constant 68 : index
    %71 = memref.load %arg2[%c68] : memref<81xf32, #tpu.memory_space<smem>>
    %c69 = arith.constant 69 : index
    %72 = memref.load %arg2[%c69] : memref<81xf32, #tpu.memory_space<smem>>
    %c70 = arith.constant 70 : index
    %73 = memref.load %arg2[%c70] : memref<81xf32, #tpu.memory_space<smem>>
    %c71 = arith.constant 71 : index
    %74 = memref.load %arg2[%c71] : memref<81xf32, #tpu.memory_space<smem>>
    %c72 = arith.constant 72 : index
    %75 = memref.load %arg2[%c72] : memref<81xf32, #tpu.memory_space<smem>>
    %c73 = arith.constant 73 : index
    %76 = memref.load %arg2[%c73] : memref<81xf32, #tpu.memory_space<smem>>
    %c74 = arith.constant 74 : index
    %77 = memref.load %arg2[%c74] : memref<81xf32, #tpu.memory_space<smem>>
    %c75 = arith.constant 75 : index
    %78 = memref.load %arg2[%c75] : memref<81xf32, #tpu.memory_space<smem>>
    %c76 = arith.constant 76 : index
    %79 = memref.load %arg2[%c76] : memref<81xf32, #tpu.memory_space<smem>>
    %c77 = arith.constant 77 : index
    %80 = memref.load %arg2[%c77] : memref<81xf32, #tpu.memory_space<smem>>
    %c78 = arith.constant 78 : index
    %81 = memref.load %arg2[%c78] : memref<81xf32, #tpu.memory_space<smem>>
    %c79 = arith.constant 79 : index
    %82 = memref.load %arg2[%c79] : memref<81xf32, #tpu.memory_space<smem>>
    %c80 = arith.constant 80 : index
    %83 = memref.load %arg2[%c80] : memref<81xf32, #tpu.memory_space<smem>>
    %84 = tpu.iota {dimensions = array<i32: 1>} : vector<9x32xi32>
    %c8_i32 = arith.constant 8 : i32
    %85 = vector.broadcast %c8_i32 : i32 to vector<9x32xi32>
    %86 = arith.cmpi sge, %84, %85 : vector<9x32xi32>
    %c8_i32_3 = arith.constant 8 : i32
    %87 = vector.broadcast %c8_i32_3 : i32 to vector<9x32xi32>
    %88 = arith.subi %84, %87 : vector<9x32xi32>
    %c2_i32 = arith.constant 2 : i32
    %c0_i32 = arith.constant 0 : i32
    %89 = arith.cmpi eq, %c2_i32, %c0_i32 : i32
    %c1_i32 = arith.constant 1 : i32
    %90 = arith.select %89, %c1_i32, %c2_i32 : i32
    %91 = vector.broadcast %90 : i32 to vector<9x32xi32>
    %92 = arith.remsi %88, %91 : vector<9x32xi32>
    %c0_i32_4 = arith.constant 0 : i32
    %93 = vector.broadcast %c0_i32_4 : i32 to vector<9x32xi32>
    %94 = arith.cmpi ne, %92, %93 : vector<9x32xi32>
    %c0_i32_5 = arith.constant 0 : i32
    %95 = vector.broadcast %c0_i32_5 : i32 to vector<9x32xi32>
    %96 = arith.cmpi slt, %92, %95 : vector<9x32xi32>
    %c0_i32_6 = arith.constant 0 : i32
    %97 = arith.cmpi slt, %90, %c0_i32_6 : i32
    %98 = vector.broadcast %97 : i1 to vector<9x32xi1>
    %99 = vector.broadcast %98 : vector<9x32xi1> to vector<9x32xi1>
    %100 = arith.xori %96, %99 : vector<9x32xi1>
    %101 = arith.andi %100, %94 : vector<9x32xi1>
    %102 = vector.broadcast %90 : i32 to vector<9x32xi32>
    %103 = arith.addi %92, %102 : vector<9x32xi32>
    %104 = arith.select %101, %103, %92 : vector<9x32xi1>, vector<9x32xi32>
    %c0_i32_7 = arith.constant 0 : i32
    %105 = vector.broadcast %c0_i32_7 : i32 to vector<9x32xi32>
    %106 = arith.cmpi eq, %104, %105 : vector<9x32xi32>
    %107 = arith.andi %86, %106 : vector<9x32xi1>
    %cst = arith.constant 0.000000e+00 : f32
    %108 = vector.broadcast %cst : f32 to vector<3x34x34xf32>
    %c0_8 = arith.constant 0 : index
    %c0_9 = arith.constant 0 : index
    %c0_10 = arith.constant 0 : index
    %109 = vector.load %arg5[%c0_8, %c0_9, %c0_10] : memref<3x34x34xf32, #tpu.memory_space<vmem>>, vector<3x34x34xf32>
    tpu.vector_store %arg5[%c0_8, %c0_9, %c0_10], %108 {strides = array<i32>} : memref<3x34x34xf32, #tpu.memory_space<vmem>>, vector<3x34x34xf32>,
    %c0_11 = arith.constant 0 : index
    %c0_12 = arith.constant 0 : index
    %c0_13 = arith.constant 0 : index
    %c0_14 = arith.constant 0 : index
    %110 = vector.load %arg1[%c0_11, %c0_12, %c0_13, %c0_14] : memref<1x3x32x32xf32, #tpu.memory_space<vmem>>, vector<1x3x32x32xf32>
    %111 = vector.shape_cast %110 : vector<1x3x32x32xf32> to vector<3x32x32xf32>
    %c0_15 = arith.constant 0 : index
    %c1_16 = arith.constant 1 : index
    %c1_17 = arith.constant 1 : index
    %112 = vector.load %arg5[%c0_15, %c1_16, %c1_17] : memref<3x34x34xf32, #tpu.memory_space<vmem>>, vector<3x32x32xf32>
    tpu.vector_store %arg5[%c0_15, %c1_16, %c1_17], %111 {strides = array<i32>} : memref<3x34x34xf32, #tpu.memory_space<vmem>>, vector<3x32x32xf32>,
    %113 = vector.broadcast %0 : f32 to vector<32x32xf32>
    %114 = vector.broadcast %1 : f32 to vector<32x32xf32>
    %115 = vector.broadcast %2 : f32 to vector<32x32xf32>
    %c0_18 = arith.constant 0 : index
    %c0_19 = arith.constant 0 : index
    %c0_20 = arith.constant 0 : index
    %116 = vector.load %arg5[%c0_18, %c0_19, %c0_20] : memref<3x34x34xf32, #tpu.memory_space<vmem>>, vector<1x34x34xf32>
    %117 = vector.shape_cast %116 : vector<1x34x34xf32> to vector<34x34xf32>
    %118 = vector.extract_strided_slice %117 {offsets = [0, 0], sizes = [34, 32], strides = [1, 1]} : vector<34x34xf32> to vector<34x32xf32>
    %119 = vector.extract_strided_slice %117 {offsets = [0, 1], sizes = [34, 32], strides = [1, 1]} : vector<34x34xf32> to vector<34x32xf32>
    %120 = vector.extract_strided_slice %117 {offsets = [0, 2], sizes = [34, 32], strides = [1, 1]} : vector<34x34xf32> to vector<34x32xf32>
    %121 = vector.extract_strided_slice %118 {offsets = [0, 0], sizes = [32, 32], strides = [1, 1]} : vector<34x32xf32> to vector<32x32xf32>
    %122 = vector.broadcast %3 : f32 to vector<32x32xf32>
    %123 = arith.mulf %122, %121 : vector<32x32xf32>
    %124 = arith.addf %113, %123 : vector<32x32xf32>
    %125 = vector.broadcast %30 : f32 to vector<32x32xf32>
    %126 = arith.mulf %125, %121 : vector<32x32xf32>
    %127 = arith.addf %114, %126 : vector<32x32xf32>
    %128 = vector.broadcast %57 : f32 to vector<32x32xf32>
    %129 = arith.mulf %128, %121 : vector<32x32xf32>
    %130 = arith.addf %115, %129 : vector<32x32xf32>
    %131 = vector.extract_strided_slice %119 {offsets = [0, 0], sizes = [32, 32], strides = [1, 1]} : vector<34x32xf32> to vector<32x32xf32>
    %132 = vector.broadcast %4 : f32 to vector<32x32xf32>
    %133 = arith.mulf %132, %131 : vector<32x32xf32>
    %134 = arith.addf %124, %133 : vector<32x32xf32>
    %135 = vector.broadcast %31 : f32 to vector<32x32xf32>
    %136 = arith.mulf %135, %131 : vector<32x32xf32>
    %137 = arith.addf %127, %136 : vector<32x32xf32>
    %138 = vector.broadcast %58 : f32 to vector<32x32xf32>
    %139 = arith.mulf %138, %131 : vector<32x32xf32>
    %140 = arith.addf %130, %139 : vector<32x32xf32>
    %141 = vector.extract_strided_slice %120 {offsets = [0, 0], sizes = [32, 32], strides = [1, 1]} : vector<34x32xf32> to vector<32x32xf32>
    %142 = vector.broadcast %5 : f32 to vector<32x32xf32>
    %143 = arith.mulf %142, %141 : vector<32x32xf32>
    %144 = arith.addf %134, %143 : vector<32x32xf32>
    %145 = vector.broadcast %32 : f32 to vector<32x32xf32>
    %146 = arith.mulf %145, %141 : vector<32x32xf32>
    %147 = arith.addf %137, %146 : vector<32x32xf32>
    %148 = vector.broadcast %59 : f32 to vector<32x32xf32>
    %149 = arith.mulf %148, %141 : vector<32x32xf32>
    %150 = arith.addf %140, %149 : vector<32x32xf32>
    %151 = vector.extract_strided_slice %118 {offsets = [1, 0], sizes = [32, 32], strides = [1, 1]} : vector<34x32xf32> to vector<32x32xf32>
    %152 = vector.broadcast %6 : f32 to vector<32x32xf32>
    %153 = arith.mulf %152, %151 : vector<32x32xf32>
    %154 = arith.addf %144, %153 : vector<32x32xf32>
    %155 = vector.broadcast %33 : f32 to vector<32x32xf32>
    %156 = arith.mulf %155, %151 : vector<32x32xf32>
    %157 = arith.addf %147, %156 : vector<32x32xf32>
    %158 = vector.broadcast %60 : f32 to vector<32x32xf32>
    %159 = arith.mulf %158, %151 : vector<32x32xf32>
    %160 = arith.addf %150, %159 : vector<32x32xf32>
    %161 = vector.extract_strided_slice %119 {offsets = [1, 0], sizes = [32, 32], strides = [1, 1]} : vector<34x32xf32> to vector<32x32xf32>
    %162 = vector.broadcast %7 : f32 to vector<32x32xf32>
    %163 = arith.mulf %162, %161 : vector<32x32xf32>
    %164 = arith.addf %154, %163 : vector<32x32xf32>
    %165 = vector.broadcast %34 : f32 to vector<32x32xf32>
    %166 = arith.mulf %165, %161 : vector<32x32xf32>
    %167 = arith.addf %157, %166 : vector<32x32xf32>
    %168 = vector.broadcast %61 : f32 to vector<32x32xf32>
    %169 = arith.mulf %168, %161 : vector<32x32xf32>
    %170 = arith.addf %160, %169 : vector<32x32xf32>
    %171 = vector.extract_strided_slice %120 {offsets = [1, 0], sizes = [32, 32], strides = [1, 1]} : vector<34x32xf32> to vector<32x32xf32>
    %172 = vector.broadcast %8 : f32 to vector<32x32xf32>
    %173 = arith.mulf %172, %171 : vector<32x32xf32>
    %174 = arith.addf %164, %173 : vector<32x32xf32>
    %175 = vector.broadcast %35 : f32 to vector<32x32xf32>
    %176 = arith.mulf %175, %171 : vector<32x32xf32>
    %177 = arith.addf %167, %176 : vector<32x32xf32>
    %178 = vector.broadcast %62 : f32 to vector<32x32xf32>
    %179 = arith.mulf %178, %171 : vector<32x32xf32>
    %180 = arith.addf %170, %179 : vector<32x32xf32>
    %181 = vector.extract_strided_slice %118 {offsets = [2, 0], sizes = [32, 32], strides = [1, 1]} : vector<34x32xf32> to vector<32x32xf32>
    %182 = vector.broadcast %9 : f32 to vector<32x32xf32>
    %183 = arith.mulf %182, %181 : vector<32x32xf32>
    %184 = arith.addf %174, %183 : vector<32x32xf32>
    %185 = vector.broadcast %36 : f32 to vector<32x32xf32>
    %186 = arith.mulf %185, %181 : vector<32x32xf32>
    %187 = arith.addf %177, %186 : vector<32x32xf32>
    %188 = vector.broadcast %63 : f32 to vector<32x32xf32>
    %189 = arith.mulf %188, %181 : vector<32x32xf32>
    %190 = arith.addf %180, %189 : vector<32x32xf32>
    %191 = vector.extract_strided_slice %119 {offsets = [2, 0], sizes = [32, 32], strides = [1, 1]} : vector<34x32xf32> to vector<32x32xf32>
    %192 = vector.broadcast %10 : f32 to vector<32x32xf32>
    %193 = arith.mulf %192, %191 : vector<32x32xf32>
    %194 = arith.addf %184, %193 : vector<32x32xf32>
    %195 = vector.broadcast %37 : f32 to vector<32x32xf32>
    %196 = arith.mulf %195, %191 : vector<32x32xf32>
    %197 = arith.addf %187, %196 : vector<32x32xf32>
    %198 = vector.broadcast %64 : f32 to vector<32x32xf32>
    %199 = arith.mulf %198, %191 : vector<32x32xf32>
    %200 = arith.addf %190, %199 : vector<32x32xf32>
    %201 = vector.extract_strided_slice %120 {offsets = [2, 0], sizes = [32, 32], strides = [1, 1]} : vector<34x32xf32> to vector<32x32xf32>
    %202 = vector.broadcast %11 : f32 to vector<32x32xf32>
    %203 = arith.mulf %202, %201 : vector<32x32xf32>
    %204 = arith.addf %194, %203 : vector<32x32xf32>
    %205 = vector.broadcast %38 : f32 to vector<32x32xf32>
    %206 = arith.mulf %205, %201 : vector<32x32xf32>
    %207 = arith.addf %197, %206 : vector<32x32xf32>
    %208 = vector.broadcast %65 : f32 to vector<32x32xf32>
    %209 = arith.mulf %208, %201 : vector<32x32xf32>
    %210 = arith.addf %200, %209 : vector<32x32xf32>
    %c1_21 = arith.constant 1 : index
    %c0_22 = arith.constant 0 : index
    %c0_23 = arith.constant 0 : index
    %211 = vector.load %arg5[%c1_21, %c0_22, %c0_23] : memref<3x34x34xf32, #tpu.memory_space<vmem>>, vector<1x34x34xf32>
    %212 = vector.shape_cast %211 : vector<1x34x34xf32> to vector<34x34xf32>
    %213 = vector.extract_strided_slice %212 {offsets = [0, 0], sizes = [34, 32], strides = [1, 1]} : vector<34x34xf32> to vector<34x32xf32>
    %214 = vector.extract_strided_slice %212 {offsets = [0, 1], sizes = [34, 32], strides = [1, 1]} : vector<34x34xf32> to vector<34x32xf32>
    %215 = vector.extract_strided_slice %212 {offsets = [0, 2], sizes = [34, 32], strides = [1, 1]} : vector<34x34xf32> to vector<34x32xf32>
    %216 = vector.extract_strided_slice %213 {offsets = [0, 0], sizes = [32, 32], strides = [1, 1]} : vector<34x32xf32> to vector<32x32xf32>
    %217 = vector.broadcast %12 : f32 to vector<32x32xf32>
    %218 = arith.mulf %217, %216 : vector<32x32xf32>
    %219 = arith.addf %204, %218 : vector<32x32xf32>
    %220 = vector.broadcast %39 : f32 to vector<32x32xf32>
    %221 = arith.mulf %220, %216 : vector<32x32xf32>
    %222 = arith.addf %207, %221 : vector<32x32xf32>
    %223 = vector.broadcast %66 : f32 to vector<32x32xf32>
    %224 = arith.mulf %223, %216 : vector<32x32xf32>
    %225 = arith.addf %210, %224 : vector<32x32xf32>
    %226 = vector.extract_strided_slice %214 {offsets = [0, 0], sizes = [32, 32], strides = [1, 1]} : vector<34x32xf32> to vector<32x32xf32>
    %227 = vector.broadcast %13 : f32 to vector<32x32xf32>
    %228 = arith.mulf %227, %226 : vector<32x32xf32>
    %229 = arith.addf %219, %228 : vector<32x32xf32>
    %230 = vector.broadcast %40 : f32 to vector<32x32xf32>
    %231 = arith.mulf %230, %226 : vector<32x32xf32>
    %232 = arith.addf %222, %231 : vector<32x32xf32>
    %233 = vector.broadcast %67 : f32 to vector<32x32xf32>
    %234 = arith.mulf %233, %226 : vector<32x32xf32>
    %235 = arith.addf %225, %234 : vector<32x32xf32>
    %236 = vector.extract_strided_slice %215 {offsets = [0, 0], sizes = [32, 32], strides = [1, 1]} : vector<34x32xf32> to vector<32x32xf32>
    %237 = vector.broadcast %14 : f32 to vector<32x32xf32>
    %238 = arith.mulf %237, %236 : vector<32x32xf32>
    %239 = arith.addf %229, %238 : vector<32x32xf32>
    %240 = vector.broadcast %41 : f32 to vector<32x32xf32>
    %241 = arith.mulf %240, %236 : vector<32x32xf32>
    %242 = arith.addf %232, %241 : vector<32x32xf32>
    %243 = vector.broadcast %68 : f32 to vector<32x32xf32>
    %244 = arith.mulf %243, %236 : vector<32x32xf32>
    %245 = arith.addf %235, %244 : vector<32x32xf32>
    %246 = vector.extract_strided_slice %213 {offsets = [1, 0], sizes = [32, 32], strides = [1, 1]} : vector<34x32xf32> to vector<32x32xf32>
    %247 = vector.broadcast %15 : f32 to vector<32x32xf32>
    %248 = arith.mulf %247, %246 : vector<32x32xf32>
    %249 = arith.addf %239, %248 : vector<32x32xf32>
    %250 = vector.broadcast %42 : f32 to vector<32x32xf32>
    %251 = arith.mulf %250, %246 : vector<32x32xf32>
    %252 = arith.addf %242, %251 : vector<32x32xf32>
    %253 = vector.broadcast %69 : f32 to vector<32x32xf32>
    %254 = arith.mulf %253, %246 : vector<32x32xf32>
    %255 = arith.addf %245, %254 : vector<32x32xf32>
    %256 = vector.extract_strided_slice %214 {offsets = [1, 0], sizes = [32, 32], strides = [1, 1]} : vector<34x32xf32> to vector<32x32xf32>
    %257 = vector.broadcast %16 : f32 to vector<32x32xf32>
    %258 = arith.mulf %257, %256 : vector<32x32xf32>
    %259 = arith.addf %249, %258 : vector<32x32xf32>
    %260 = vector.broadcast %43 : f32 to vector<32x32xf32>
    %261 = arith.mulf %260, %256 : vector<32x32xf32>
    %262 = arith.addf %252, %261 : vector<32x32xf32>
    %263 = vector.broadcast %70 : f32 to vector<32x32xf32>
    %264 = arith.mulf %263, %256 : vector<32x32xf32>
    %265 = arith.addf %255, %264 : vector<32x32xf32>
    %266 = vector.extract_strided_slice %215 {offsets = [1, 0], sizes = [32, 32], strides = [1, 1]} : vector<34x32xf32> to vector<32x32xf32>
    %267 = vector.broadcast %17 : f32 to vector<32x32xf32>
    %268 = arith.mulf %267, %266 : vector<32x32xf32>
    %269 = arith.addf %259, %268 : vector<32x32xf32>
    %270 = vector.broadcast %44 : f32 to vector<32x32xf32>
    %271 = arith.mulf %270, %266 : vector<32x32xf32>
    %272 = arith.addf %262, %271 : vector<32x32xf32>
    %273 = vector.broadcast %71 : f32 to vector<32x32xf32>
    %274 = arith.mulf %273, %266 : vector<32x32xf32>
    %275 = arith.addf %265, %274 : vector<32x32xf32>
    %276 = vector.extract_strided_slice %213 {offsets = [2, 0], sizes = [32, 32], strides = [1, 1]} : vector<34x32xf32> to vector<32x32xf32>
    %277 = vector.broadcast %18 : f32 to vector<32x32xf32>
    %278 = arith.mulf %277, %276 : vector<32x32xf32>
    %279 = arith.addf %269, %278 : vector<32x32xf32>
    %280 = vector.broadcast %45 : f32 to vector<32x32xf32>
    %281 = arith.mulf %280, %276 : vector<32x32xf32>
    %282 = arith.addf %272, %281 : vector<32x32xf32>
    %283 = vector.broadcast %72 : f32 to vector<32x32xf32>
    %284 = arith.mulf %283, %276 : vector<32x32xf32>
    %285 = arith.addf %275, %284 : vector<32x32xf32>
    %286 = vector.extract_strided_slice %214 {offsets = [2, 0], sizes = [32, 32], strides = [1, 1]} : vector<34x32xf32> to vector<32x32xf32>
    %287 = vector.broadcast %19 : f32 to vector<32x32xf32>
    %288 = arith.mulf %287, %286 : vector<32x32xf32>
    %289 = arith.addf %279, %288 : vector<32x32xf32>
    %290 = vector.broadcast %46 : f32 to vector<32x32xf32>
    %291 = arith.mulf %290, %286 : vector<32x32xf32>
    %292 = arith.addf %282, %291 : vector<32x32xf32>
    %293 = vector.broadcast %73 : f32 to vector<32x32xf32>
    %294 = arith.mulf %293, %286 : vector<32x32xf32>
    %295 = arith.addf %285, %294 : vector<32x32xf32>
    %296 = vector.extract_strided_slice %215 {offsets = [2, 0], sizes = [32, 32], strides = [1, 1]} : vector<34x32xf32> to vector<32x32xf32>
    %297 = vector.broadcast %20 : f32 to vector<32x32xf32>
    %298 = arith.mulf %297, %296 : vector<32x32xf32>
    %299 = arith.addf %289, %298 : vector<32x32xf32>
    %300 = vector.broadcast %47 : f32 to vector<32x32xf32>
    %301 = arith.mulf %300, %296 : vector<32x32xf32>
    %302 = arith.addf %292, %301 : vector<32x32xf32>
    %303 = vector.broadcast %74 : f32 to vector<32x32xf32>
    %304 = arith.mulf %303, %296 : vector<32x32xf32>
    %305 = arith.addf %295, %304 : vector<32x32xf32>
    %c2_24 = arith.constant 2 : index
    %c0_25 = arith.constant 0 : index
    %c0_26 = arith.constant 0 : index
    %306 = vector.load %arg5[%c2_24, %c0_25, %c0_26] : memref<3x34x34xf32, #tpu.memory_space<vmem>>, vector<1x34x34xf32>
    %307 = vector.shape_cast %306 : vector<1x34x34xf32> to vector<34x34xf32>
    %308 = vector.extract_strided_slice %307 {offsets = [0, 0], sizes = [34, 32], strides = [1, 1]} : vector<34x34xf32> to vector<34x32xf32>
    %309 = vector.extract_strided_slice %307 {offsets = [0, 1], sizes = [34, 32], strides = [1, 1]} : vector<34x34xf32> to vector<34x32xf32>
    %310 = vector.extract_strided_slice %307 {offsets = [0, 2], sizes = [34, 32], strides = [1, 1]} : vector<34x34xf32> to vector<34x32xf32>
    %311 = vector.extract_strided_slice %308 {offsets = [0, 0], sizes = [32, 32], strides = [1, 1]} : vector<34x32xf32> to vector<32x32xf32>
    %312 = vector.broadcast %21 : f32 to vector<32x32xf32>
    %313 = arith.mulf %312, %311 : vector<32x32xf32>
    %314 = arith.addf %299, %313 : vector<32x32xf32>
    %315 = vector.broadcast %48 : f32 to vector<32x32xf32>
    %316 = arith.mulf %315, %311 : vector<32x32xf32>
    %317 = arith.addf %302, %316 : vector<32x32xf32>
    %318 = vector.broadcast %75 : f32 to vector<32x32xf32>
    %319 = arith.mulf %318, %311 : vector<32x32xf32>
    %320 = arith.addf %305, %319 : vector<32x32xf32>
    %321 = vector.extract_strided_slice %309 {offsets = [0, 0], sizes = [32, 32], strides = [1, 1]} : vector<34x32xf32> to vector<32x32xf32>
    %322 = vector.broadcast %22 : f32 to vector<32x32xf32>
    %323 = arith.mulf %322, %321 : vector<32x32xf32>
    %324 = arith.addf %314, %323 : vector<32x32xf32>
    %325 = vector.broadcast %49 : f32 to vector<32x32xf32>
    %326 = arith.mulf %325, %321 : vector<32x32xf32>
    %327 = arith.addf %317, %326 : vector<32x32xf32>
    %328 = vector.broadcast %76 : f32 to vector<32x32xf32>
    %329 = arith.mulf %328, %321 : vector<32x32xf32>
    %330 = arith.addf %320, %329 : vector<32x32xf32>
    %331 = vector.extract_strided_slice %310 {offsets = [0, 0], sizes = [32, 32], strides = [1, 1]} : vector<34x32xf32> to vector<32x32xf32>
    %332 = vector.broadcast %23 : f32 to vector<32x32xf32>
    %333 = arith.mulf %332, %331 : vector<32x32xf32>
    %334 = arith.addf %324, %333 : vector<32x32xf32>
    %335 = vector.broadcast %50 : f32 to vector<32x32xf32>
    %336 = arith.mulf %335, %331 : vector<32x32xf32>
    %337 = arith.addf %327, %336 : vector<32x32xf32>
    %338 = vector.broadcast %77 : f32 to vector<32x32xf32>
    %339 = arith.mulf %338, %331 : vector<32x32xf32>
    %340 = arith.addf %330, %339 : vector<32x32xf32>
    %341 = vector.extract_strided_slice %308 {offsets = [1, 0], sizes = [32, 32], strides = [1, 1]} : vector<34x32xf32> to vector<32x32xf32>
    %342 = vector.broadcast %24 : f32 to vector<32x32xf32>
    %343 = arith.mulf %342, %341 : vector<32x32xf32>
    %344 = arith.addf %334, %343 : vector<32x32xf32>
    %345 = vector.broadcast %51 : f32 to vector<32x32xf32>
    %346 = arith.mulf %345, %341 : vector<32x32xf32>
    %347 = arith.addf %337, %346 : vector<32x32xf32>
    %348 = vector.broadcast %78 : f32 to vector<32x32xf32>
    %349 = arith.mulf %348, %341 : vector<32x32xf32>
    %350 = arith.addf %340, %349 : vector<32x32xf32>
    %351 = vector.extract_strided_slice %309 {offsets = [1, 0], sizes = [32, 32], strides = [1, 1]} : vector<34x32xf32> to vector<32x32xf32>
    %352 = vector.broadcast %25 : f32 to vector<32x32xf32>
    %353 = arith.mulf %352, %351 : vector<32x32xf32>
    %354 = arith.addf %344, %353 : vector<32x32xf32>
    %355 = vector.broadcast %52 : f32 to vector<32x32xf32>
    %356 = arith.mulf %355, %351 : vector<32x32xf32>
    %357 = arith.addf %347, %356 : vector<32x32xf32>
    %358 = vector.broadcast %79 : f32 to vector<32x32xf32>
    %359 = arith.mulf %358, %351 : vector<32x32xf32>
    %360 = arith.addf %350, %359 : vector<32x32xf32>
    %361 = vector.extract_strided_slice %310 {offsets = [1, 0], sizes = [32, 32], strides = [1, 1]} : vector<34x32xf32> to vector<32x32xf32>
    %362 = vector.broadcast %26 : f32 to vector<32x32xf32>
    %363 = arith.mulf %362, %361 : vector<32x32xf32>
    %364 = arith.addf %354, %363 : vector<32x32xf32>
    %365 = vector.broadcast %53 : f32 to vector<32x32xf32>
    %366 = arith.mulf %365, %361 : vector<32x32xf32>
    %367 = arith.addf %357, %366 : vector<32x32xf32>
    %368 = vector.broadcast %80 : f32 to vector<32x32xf32>
    %369 = arith.mulf %368, %361 : vector<32x32xf32>
    %370 = arith.addf %360, %369 : vector<32x32xf32>
    %371 = vector.extract_strided_slice %308 {offsets = [2, 0], sizes = [32, 32], strides = [1, 1]} : vector<34x32xf32> to vector<32x32xf32>
    %372 = vector.broadcast %27 : f32 to vector<32x32xf32>
    %373 = arith.mulf %372, %371 : vector<32x32xf32>
    %374 = arith.addf %364, %373 : vector<32x32xf32>
    %375 = vector.broadcast %54 : f32 to vector<32x32xf32>
    %376 = arith.mulf %375, %371 : vector<32x32xf32>
    %377 = arith.addf %367, %376 : vector<32x32xf32>
    %378 = vector.broadcast %81 : f32 to vector<32x32xf32>
    %379 = arith.mulf %378, %371 : vector<32x32xf32>
    %380 = arith.addf %370, %379 : vector<32x32xf32>
    %381 = vector.extract_strided_slice %309 {offsets = [2, 0], sizes = [32, 32], strides = [1, 1]} : vector<34x32xf32> to vector<32x32xf32>
    %382 = vector.broadcast %28 : f32 to vector<32x32xf32>
    %383 = arith.mulf %382, %381 : vector<32x32xf32>
    %384 = arith.addf %374, %383 : vector<32x32xf32>
    %385 = vector.broadcast %55 : f32 to vector<32x32xf32>
    %386 = arith.mulf %385, %381 : vector<32x32xf32>
    %387 = arith.addf %377, %386 : vector<32x32xf32>
    %388 = vector.broadcast %82 : f32 to vector<32x32xf32>
    %389 = arith.mulf %388, %381 : vector<32x32xf32>
    %390 = arith.addf %380, %389 : vector<32x32xf32>
    %391 = vector.extract_strided_slice %310 {offsets = [2, 0], sizes = [32, 32], strides = [1, 1]} : vector<34x32xf32> to vector<32x32xf32>
    %392 = vector.broadcast %29 : f32 to vector<32x32xf32>
    %393 = arith.mulf %392, %391 : vector<32x32xf32>
    %394 = arith.addf %384, %393 : vector<32x32xf32>
    %395 = vector.broadcast %56 : f32 to vector<32x32xf32>
    %396 = arith.mulf %395, %391 : vector<32x32xf32>
    %397 = arith.addf %387, %396 : vector<32x32xf32>
    %398 = vector.broadcast %83 : f32 to vector<32x32xf32>
    %399 = arith.mulf %398, %391 : vector<32x32xf32>
    %400 = arith.addf %390, %399 : vector<32x32xf32>
    %c0_27 = arith.constant 0 : index
    %c0_28 = arith.constant 0 : index
    %c0_29 = arith.constant 0 : index
    %c0_30 = arith.constant 0 : index
    %401 = vector.load %arg4[%c0_27, %c0_28, %c0_29, %c0_30] : memref<1x3x32x32xf32, #tpu.memory_space<vmem>>, vector<1x1x32x32xf32>
    %402 = vector.shape_cast %401 : vector<1x1x32x32xf32> to vector<32x32xf32>
    %403 = vector.shape_cast %394 : vector<32x32xf32> to vector<1x1x32x32xf32>
    tpu.vector_store %arg4[%c0_27, %c0_28, %c0_29, %c0_30], %403 {strides = array<i32>} : memref<1x3x32x32xf32, #tpu.memory_space<vmem>>, vector<1x1x32x32xf32>,
    %c0_31 = arith.constant 0 : index
    %c1_32 = arith.constant 1 : index
    %c0_33 = arith.constant 0 : index
    %c0_34 = arith.constant 0 : index
    %404 = vector.load %arg4[%c0_31, %c1_32, %c0_33, %c0_34] : memref<1x3x32x32xf32, #tpu.memory_space<vmem>>, vector<1x1x32x32xf32>
    %405 = vector.shape_cast %404 : vector<1x1x32x32xf32> to vector<32x32xf32>
    %406 = vector.shape_cast %397 : vector<32x32xf32> to vector<1x1x32x32xf32>
    tpu.vector_store %arg4[%c0_31, %c1_32, %c0_33, %c0_34], %406 {strides = array<i32>} : memref<1x3x32x32xf32, #tpu.memory_space<vmem>>, vector<1x1x32x32xf32>,
    %c0_35 = arith.constant 0 : index
    %c2_36 = arith.constant 2 : index
    %c0_37 = arith.constant 0 : index
    %c0_38 = arith.constant 0 : index
    %407 = vector.load %arg4[%c0_35, %c2_36, %c0_37, %c0_38] : memref<1x3x32x32xf32, #tpu.memory_space<vmem>>, vector<1x1x32x32xf32>
    %408 = vector.shape_cast %407 : vector<1x1x32x32xf32> to vector<32x32xf32>
    %409 = vector.shape_cast %400 : vector<32x32xf32> to vector<1x1x32x32xf32>
    tpu.vector_store %arg4[%c0_35, %c2_36, %c0_37, %c0_38], %409 {strides = array<i32>} : memref<1x3x32x32xf32, #tpu.memory_space<vmem>>, vector<1x1x32x32xf32>,
    %410 = vector.extract_strided_slice %397 {offsets = [16, 0], sizes = [9, 32], strides = [1, 1]} : vector<32x32xf32> to vector<9x32xf32>
    %cst_39 = arith.constant 0.000000e+00 : f32
    %411 = vector.broadcast %cst_39 : f32 to vector<9x32xf32>
    %412 = arith.maximumf %410, %411 : vector<9x32xf32>
    %413 = arith.select %107, %412, %410 : vector<9x32xi1>, vector<9x32xf32>
    %c0_40 = arith.constant 0 : index
    %c1_41 = arith.constant 1 : index
    %c16_42 = arith.constant 16 : index
    %c0_43 = arith.constant 0 : index
    %414 = vector.load %arg4[%c0_40, %c1_41, %c16_42, %c0_43] : memref<1x3x32x32xf32, #tpu.memory_space<vmem>>, vector<1x1x9x32xf32>
    %415 = vector.shape_cast %414 : vector<1x1x9x32xf32> to vector<9x32xf32>
    %416 = vector.shape_cast %413 : vector<9x32xf32> to vector<1x1x9x32xf32>
    tpu.vector_store %arg4[%c0_40, %c1_41, %c16_42, %c0_43], %416 {strides = array<i32>} : memref<1x3x32x32xf32, #tpu.memory_space<vmem>>, vector<1x1x9x32xf32>,
    return
  }
  func.func @transform_0(%arg0: i32) -> (i32, i32, i32, i32) {
    %c0_i32 = arith.constant 0 : i32
    %c0_i32_0 = arith.constant 0 : i32
    %c0_i32_1 = arith.constant 0 : i32
    %c0_i32_2 = arith.constant 0 : i32
    return %arg0, %c0_i32, %c0_i32_0, %c0_i32_1 : i32, i32, i32, i32
  }
  func.func @transform_1(%arg0: i32) -> i32 {
    %c0_i32 = arith.constant 0 : i32
    %c0_i32_0 = arith.constant 0 : i32
    return %c0_i32 : i32
  }
  func.func @transform_2(%arg0: i32) -> i32 {
    %c0_i32 = arith.constant 0 : i32
    %c0_i32_0 = arith.constant 0 : i32
    return %c0_i32 : i32
  }
  func.func @transform_3(%arg0: i32) -> (i32, i32, i32, i32) {
    %c0_i32 = arith.constant 0 : i32
    %c0_i32_0 = arith.constant 0 : i32
    %c0_i32_1 = arith.constant 0 : i32
    %c0_i32_2 = arith.constant 0 : i32
    return %arg0, %c0_i32, %c0_i32_0, %c0_i32_1 : i32, i32, i32, i32
  }
}

</mosaic_0001>

<llo_original>
// kernel: tpu_custom_call.1
$region0: #{tpu_custom_call.1}
  #allocation0 [shape = 'u32[]', space=smem, size = 0x4, offset = 0x4, fixed_abs, tag = 'smem constant byte address 0x4 - core index']
  #allocation1 [shape = 'u32[144,128]{1,0:T(1,128)}', space=vmem, size = 0x12000, scoped, tag = 'internal scratch']
  #allocation2 [shape = 'f32[3,34,34]{2,1,0:T(8,128)}', space=vmem, size = 0xf000, scoped, tag = 'scratch operand']
  %s0 = inlined_call_operand.hbm [shape: f32[2,3,32,32], index: 0, kind: input, shape index: {}]
  %s1 = inlined_call_operand.vmem [shape: f32[81], index: 1, kind: input, shape index: {}]
  %s2 = inlined_call_operand.vmem [shape: f32[3], index: 2, kind: input, shape index: {}]
  %s3 = inlined_call_operand.hbm [shape: f32[2,3,32,32], index: 3, kind: output, shape index: {}]
  %s4 = sld [smem:[#allocation0]]
  $region57: #{tpu_custom_call.1} parent=0
    _
  %s6 = ssub.s32 1, %s4
  %s7 = scalar_select 0, %s6, %s4
  $region1: #{tpu_custom_call.1} parent=0
    #allocation3 [shape = 'u8[98304]{0}', space=vmem, size = 0x18000, scoped, tag = 'input window, operand 0']
    #allocation4 [shape = 's32[2]{0}', space=sflag, size = 0x8, scoped, tag = 'scoped memory for tpu_custom_call.1']
    #allocation5 [shape = 's32[2]{0}', space=sflag, size = 0x8, scoped, tag = 'scoped memory for tpu_custom_call.1']
    #allocation6 [shape = 's32[2]{0}', space=sflag, size = 0x8, scoped, tag = 'scoped memory for tpu_custom_call.1']
    #allocation7 [shape = 'u8[512]{0}', space=smem, size = 0x200, scoped, tag = 'input window, operand 1, single buffered']
    #allocation8 [shape = 'u8[512]{0}', space=smem, size = 0x200, scoped, tag = 'input window, operand 2, single buffered']
    #allocation9 [shape = 's32[1]{0}', space=sflag, size = 0x4, scoped, tag = 'scoped memory for tpu_custom_call.1']
    #allocation10 [shape = 'u8[98304]{0}', space=vmem, size = 0x18000, scoped, tag = 'output window, operand 0']
    %8 = vsyncpa [#allocation4], 0
    %s9 = scalar_lea.sflag [#allocation4], 1
    %10 = vsyncpa %s9, 0
    %11 = vsyncpa [#allocation6], 0
    %12 = vsyncpa [#allocation9], 0
    %13 = vsyncpa [#allocation5], 0
    %s14 = scalar_lea.sflag [#allocation5], 1
    %15 = vsyncpa %s14, 0
    loop: start=0, step=1, limit=4
    $region2: #{tpu_custom_call.1} parent=1 // loop_pre_header
      _
    $region3: #{tpu_custom_call.1} parent=1 // loop_header
      %s17 = sphi 0, %s21
      %p18 = scmp.ge.s32.totalorder %s17, 4
      %s27 = sphi 0, %s29
      %s30 = sphi 0, %s27
      %s31 = sphi 0, %s30
      %s47 = sphi 0, %s31
      %s51 = sphi 0, %s51
      %s53 = sphi 0, %s51
      %s54 = sphi 0, %s53
      %s68 = sphi 0, %s54
      %s72 = sphi 0, %s72
      %s74 = sphi 0, %s72
      %s75 = sphi 0, %s74
      %s89 = sphi 0, %s75
      %s95 = sphi 0, %s97
      %s98 = sphi 0, %s95
      %s99 = sphi 0, %s98
      %s115 = sphi 0, %s99
    $region4: #{tpu_custom_call.1} parent=1 // loop_header_branch
      %20 = sbr.rel (%p18) target = $region8
    $region5: #{tpu_custom_call.1} parent=1 // loop_body
      %s22 = ssub.s32 %s17, 1
      %s23 = ssub.s32 %s17, 2
      %s24 = sadd.s32 %s17, 1
      %s25 = ssub.s32 %s17, %s24
      %p26 = scmp.eq.s32.totalorder %s25, 0
      %s28 = sadd.s32 %s27, 1
      %s29 = scalar_select %p26, %s27, %s28
      %p32 = pneg %p26
      %p33 = scmp.eq.s32.totalorder %s17, 1
      %p34 = por %p32, %p33
      %p35 = scmp.ne.s32.totalorder %s27, %s30
      %p36 = scmp.eq.s32.totalorder %s17, 0
      %p37 = por %p35, %p36
      %p38 = scmp.ne.s32.totalorder %s27, %s30
      %p39 = scmp.eq.s32.totalorder %s22, 1
      %p40 = por %p38, %p39
      %p41 = scmp.ne.s32.totalorder %s30, %s31
      %p42 = scmp.eq.s32.totalorder %s22, 0
      %p43 = por %p41, %p42
      %p44 = scmp.ne.s32.totalorder %s30, %s31
      %p45 = scmp.eq.s32.totalorder %s23, 1
      %p46 = por %p44, %p45
      %p48 = scmp.ne.s32.totalorder %s31, %s47
      %p49 = scmp.eq.s32.totalorder %s23, 0
      %p50 = por %p48, %p49
      %s52 = sadd.s32 %s51, 1
      %p55 = scmp.eq.s32.totalorder %s17, 1
      %p56 = scmp.ne.s32.totalorder %s51, %s53
      %p57 = scmp.eq.s32.totalorder %s17, 0
      %p58 = por %p56, %p57
      %p59 = scmp.ne.s32.totalorder %s51, %s53
      %p60 = scmp.eq.s32.totalorder %s22, 1
      %p61 = por %p59, %p60
      %p62 = scmp.ne.s32.totalorder %s53, %s54
      %p63 = scmp.eq.s32.totalorder %s22, 0
      %p64 = por %p62, %p63
      %p65 = scmp.ne.s32.totalorder %s53, %s54
      %p66 = scmp.eq.s32.totalorder %s23, 1
      %p67 = por %p65, %p66
      %p69 = scmp.ne.s32.totalorder %s54, %s68
      %p70 = scmp.eq.s32.totalorder %s23, 0
      %p71 = por %p69, %p70
      %s73 = sadd.s32 %s72, 1
      %p76 = scmp.eq.s32.totalorder %s17, 1
      %p77 = scmp.ne.s32.totalorder %s72, %s74
      %p78 = scmp.eq.s32.totalorder %s17, 0
      %p79 = por %p77, %p78
      %p80 = scmp.ne.s32.totalorder %s72, %s74
      %p81 = scmp.eq.s32.totalorder %s22, 1
      %p82 = por %p80, %p81
      %p83 = scmp.ne.s32.totalorder %s74, %s75
      %p84 = scmp.eq.s32.totalorder %s22, 0
      %p85 = por %p83, %p84
      %p86 = scmp.ne.s32.totalorder %s74, %s75
      %p87 = scmp.eq.s32.totalorder %s23, 1
      %p88 = por %p86, %p87
      %p90 = scmp.ne.s32.totalorder %s75, %s89
      %p91 = scmp.eq.s32.totalorder %s23, 0
      %p92 = por %p90, %p91
      %s93 = ssub.s32 %s17, %s24
      %p94 = scmp.eq.s32.totalorder %s93, 0
      %s96 = sadd.s32 %s95, 1
      %s97 = scalar_select %p94, %s95, %s96
      %p100 = pneg %p94
      %p101 = scmp.eq.s32.totalorder %s17, 1
      %p102 = por %p100, %p101
      %p103 = scmp.ne.s32.totalorder %s95, %s98
      %p104 = scmp.eq.s32.totalorder %s17, 0
      %p105 = por %p103, %p104
      %p106 = scmp.ne.s32.totalorder %s95, %s98
      %p107 = scmp.eq.s32.totalorder %s22, 1
      %p108 = por %p106, %p107
      %p109 = scmp.ne.s32.totalorder %s98, %s99
      %p110 = scmp.eq.s32.totalorder %s22, 0
      %p111 = por %p109, %p110
      %p112 = scmp.ne.s32.totalorder %s98, %s99
      %p113 = scmp.eq.s32.totalorder %s23, 1
      %p114 = por %p112, %p113
      %p116 = scmp.ne.s32.totalorder %s99, %s115
      %p117 = scmp.eq.s32.totalorder %s23, 0
      %p118 = por %p116, %p117
      %p119 = scmp.le.s32.totalorder 1, %s17
      %p120 = scmp.lt.s32.totalorder %s17, 3
      %p121 = pnand %p119, %p120
      %p122 = pneg %p121
      // Predicated region
      $region9: #{tpu_custom_call.1} parent=5 // pred_check
        _
      $region10: #{tpu_custom_call.1} parent=5 // pred_check_branch
        %124 = sbr.rel (%p121) target = $region12
      $region11: #{tpu_custom_call.1} parent=5 // pred_region
        %s125 = ssub.s32 %s17, 1
        // Predicated region
        $region13: #{tpu_custom_call.1} parent=11 // pred_check
          %p126 = pneg %p64
        $region14: #{tpu_custom_call.1} parent=11 // pred_check_branch
          %128 = sbr.rel (%p126) target = $region16
        $region15: #{tpu_custom_call.1} parent=11 // pred_region
          %s130 = ssub.s32 16, 16
          %131 = vsyncadd [#allocation6], %s130
          %s133 = sshll.u32 %s1, 4
          %s134 = int_to_ptr.vmem [resolvable:$true] %s133
          %136 = dma.vmem_to_smem %s134, 16, [#allocation7], [#allocation6]
        $region16: #{tpu_custom_call.1} parent=11 // pred_fallthru
          _
        // Predicated region
        $region17: #{tpu_custom_call.1} parent=11 // pred_check
          %p137 = pneg %p85
        $region18: #{tpu_custom_call.1} parent=11 // pred_check_branch
          %139 = sbr.rel (%p137) target = $region20
        $region19: #{tpu_custom_call.1} parent=11 // pred_region
          %s141 = ssub.s32 16, 16
          %142 = vsyncadd [#allocation9], %s141
          %s144 = sshll.u32 %s2, 4
          %s145 = int_to_ptr.vmem [resolvable:$true] %s144
          %147 = dma.vmem_to_smem %s145, 16, [#allocation8], [#allocation9]
        $region20: #{tpu_custom_call.1} parent=11 // pred_fallthru
          _
      $region12: #{tpu_custom_call.1} parent=5 // pred_fallthru
        _
      %p148 = scmp.lt.s32.totalorder %s17, 2
      // Predicated region
      $region21: #{tpu_custom_call.1} parent=5 // pred_check
        %p149 = pneg %p148
      $region22: #{tpu_custom_call.1} parent=5 // pred_check_branch
        %151 = sbr.rel (%p149) target = $region24
      $region23: #{tpu_custom_call.1} parent=5 // pred_region
        // Predicated region
        $region25: #{tpu_custom_call.1} parent=23 // pred_check
          %p152 = pneg %p37
        $region26: #{tpu_custom_call.1} parent=23 // pred_check_branch
          %154 = sbr.rel (%p152) target = $region28
        $region27: #{tpu_custom_call.1} parent=23 // pred_region
          %s155 = sand.u32 %s27, 1
          %s156 = scalar_lea.sflag [#allocation4], %s155
          %s157 = sand.u32 %s27, 1
          %s158 = smul.addr %s157, 96
          %s159 = scalar_lea.vmem [#allocation3], %s158
          %s161 = ssub.s32 1536, 1536
          %162 = vsyncadd %s156, %s161
          %s163 = smul.addr %s17, 12
          %s164 = smul.addr %s163, 128
          %s165 = scalar_lea.hbm %s0, %s164
          %s166 = sshll.u32 %s159, 4
          %s167 = int_to_ptr.vmem [resolvable:$true] %s166
          %172 = dma.hbm_to_vmem [thread:$0]  %s165, 1536, %s167, %s156, 128, 128, 8
        $region28: #{tpu_custom_call.1} parent=23 // pred_fallthru
          _
      $region24: #{tpu_custom_call.1} parent=5 // pred_fallthru
        _
      %p173 = scmp.le.s32.totalorder 1, %s17
      %p174 = scmp.lt.s32.totalorder %s17, 3
      %p175 = pnand %p173, %p174
      %p176 = pneg %p175
      // Predicated region
      $region29: #{tpu_custom_call.1} parent=5 // pred_check
        _
      $region30: #{tpu_custom_call.1} parent=5 // pred_check_branch
        %178 = sbr.rel (%p175) target = $region32
      $region31: #{tpu_custom_call.1} parent=5 // pred_region
        %s179 = ssub.s32 %s17, 1
        %s180 = sand.u32 %s30, 1
        %s181 = scalar_lea.sflag [#allocation4], %s180
        %s182 = sand.u32 %s30, 1
        %s183 = smul.addr %s182, 96
        %s184 = scalar_lea.vmem [#allocation3], %s183
        // Predicated region
        $region33: #{tpu_custom_call.1} parent=31 // pred_check
          %p185 = pneg %p43
        $region34: #{tpu_custom_call.1} parent=31 // pred_check_branch
          %187 = sbr.rel (%p185) target = $region36
        $region35: #{tpu_custom_call.1} parent=31 // pred_region
          %188 = dma.done %s181, 1536
        $region36: #{tpu_custom_call.1} parent=31 // pred_fallthru
          _
        // Predicated region
        $region37: #{tpu_custom_call.1} parent=31 // pred_check
          %p189 = pneg %p64
        $region38: #{tpu_custom_call.1} parent=31 // pred_check_branch
          %191 = sbr.rel (%p189) target = $region40
        $region39: #{tpu_custom_call.1} parent=31 // pred_region
          %192 = dma.done [#allocation6], 16
        $region40: #{tpu_custom_call.1} parent=31 // pred_fallthru
          _
        // Predicated region
        $region41: #{tpu_custom_call.1} parent=31 // pred_check
          %p193 = pneg %p85
        $region42: #{tpu_custom_call.1} parent=31 // pred_check_branch
          %195 = sbr.rel (%p193) target = $region44
        $region43: #{tpu_custom_call.1} parent=31 // pred_region
          %196 = dma.done [#allocation9], 16
        $region44: #{tpu_custom_call.1} parent=31 // pred_fallthru
          _
        %197 = sfence
        %s198 = sand.u32 %s30, 1
        %s199 = scalar_lea.sflag [#allocation4], %s198
        %s200 = sand.u32 %s30, 1
        %s201 = smul.addr %s200, 96
        %s202 = scalar_lea.vmem [#allocation3], %s201
        %p203 = pneg %p43
        %p204 = pneg %p40
        %p205 = pneg %p64
        %p206 = pneg %p61
        %p207 = pneg %p85
        %p208 = pneg %p82
        %p209 = pneg %p111
        %p210 = pneg %p108
        %s211 = sand.u32 %s98, 1
        %s212 = scalar_lea.sflag [#allocation5], %s211
        %s213 = sand.u32 %s98, 1
        %s214 = smul.addr %s213, 96
        %s215 = scalar_lea.vmem [#allocation10], %s214
        %s216 = sld [smem:[#allocation8]]
        %s217 = sld [smem:[#allocation8 + $0x1]]
        %s218 = sld [smem:[#allocation8 + $0x2]]
        %s219 = sld [smem:[#allocation7]]
        %s220 = sld [smem:[#allocation7 + $0x1]]
        %s221 = sld [smem:[#allocation7 + $0x2]]
        %s222 = sld [smem:[#allocation7 + $0x3]]
        %s223 = sld [smem:[#allocation7 + $0x4]]
        %s224 = sld [smem:[#allocation7 + $0x5]]
        %s225 = sld [smem:[#allocation7 + $0x6]]
        %s226 = sld [smem:[#allocation7 + $0x7]]
        %s227 = sld [smem:[#allocation7 + $0x8]]
        %s228 = sld [smem:[#allocation7 + $0x9]]
        %s229 = sld [smem:[#allocation7 + $0xa]]
        %s230 = sld [smem:[#allocation7 + $0xb]]
        %s231 = sld [smem:[#allocation7 + $0xc]]
        %s232 = sld [smem:[#allocation7 + $0xd]]
        %s233 = sld [smem:[#allocation7 + $0xe]]
        %s234 = sld [smem:[#allocation7 + $0xf]]
        %s235 = sld [smem:[#allocation7 + $0x10]]
        %s236 = sld [smem:[#allocation7 + $0x11]]
        %s237 = sld [smem:[#allocation7 + $0x12]]
        %s238 = sld [smem:[#allocation7 + $0x13]]
        %s239 = sld [smem:[#allocation7 + $0x14]]
        %s240 = sld [smem:[#allocation7 + $0x15]]
        %s241 = sld [smem:[#allocation7 + $0x16]]
        %s242 = sld [smem:[#allocation7 + $0x17]]
        %s243 = sld [smem:[#allocation7 + $0x18]]
        %s244 = sld [smem:[#allocation7 + $0x19]]
        %s245 = sld [smem:[#allocation7 + $0x1a]]
        %s246 = sld [smem:[#allocation7 + $0x1b]]
        %s247 = sld [smem:[#allocation7 + $0x1c]]
        %s248 = sld [smem:[#allocation7 + $0x1d]]
        %s249 = sld [smem:[#allocation7 + $0x1e]]
        %s250 = sld [smem:[#allocation7 + $0x1f]]
        %s251 = sld [smem:[#allocation7 + $0x20]]
        %s252 = sld [smem:[#allocation7 + $0x21]]
        %s253 = sld [smem:[#allocation7 + $0x22]]
        %s254 = sld [smem:[#allocation7 + $0x23]]
        %s255 = sld [smem:[#allocation7 + $0x24]]
        %s256 = sld [smem:[#allocation7 + $0x25]]
        %s257 = sld [smem:[#allocation7 + $0x26]]
        %s258 = sld [smem:[#allocation7 + $0x27]]
        %s259 = sld [smem:[#allocation7 + $0x28]]
        %s260 = sld [smem:[#allocation7 + $0x29]]
        %s261 = sld [smem:[#allocation7 + $0x2a]]
        %s262 = sld [smem:[#allocation7 + $0x2b]]
        %s263 = sld [smem:[#allocation7 + $0x2c]]
        %s264 = sld [smem:[#allocation7 + $0x2d]]
        %s265 = sld [smem:[#allocation7 + $0x2e]]
        %s266 = sld [smem:[#allocation7 + $0x2f]]
        %s267 = sld [smem:[#allocation7 + $0x30]]
        %s268 = sld [smem:[#allocation7 + $0x31]]
        %s269 = sld [smem:[#allocation7 + $0x32]]
        %s270 = sld [smem:[#allocation7 + $0x33]]
        %s271 = sld [smem:[#allocation7 + $0x34]]
        %s272 = sld [smem:[#allocation7 + $0x35]]
        %s273 = sld [smem:[#allocation7 + $0x36]]
        %s274 = sld [smem:[#allocation7 + $0x37]]
        %s275 = sld [smem:[#allocation7 + $0x38]]
        %s276 = sld [smem:[#allocation7 + $0x39]]
        %s277 = sld [smem:[#allocation7 + $0x3a]]
        %s278 = sld [smem:[#allocation7 + $0x3b]]
        %s279 = sld [smem:[#allocation7 + $0x3c]]
        %s280 = sld [smem:[#allocation7 + $0x3d]]
        %s281 = sld [smem:[#allocation7 + $0x3e]]
        %s282 = sld [smem:[#allocation7 + $0x3f]]
        %s283 = sld [smem:[#allocation7 + $0x40]]
        %s284 = sld [smem:[#allocation7 + $0x41]]
        %s285 = sld [smem:[#allocation7 + $0x42]]
        %s286 = sld [smem:[#allocation7 + $0x43]]
        %s287 = sld [smem:[#allocation7 + $0x44]]
        %s288 = sld [smem:[#allocation7 + $0x45]]
        %s289 = sld [smem:[#allocation7 + $0x46]]
        %s290 = sld [smem:[#allocation7 + $0x47]]
        %s291 = sld [smem:[#allocation7 + $0x48]]
        %s292 = sld [smem:[#allocation7 + $0x49]]
        %s293 = sld [smem:[#allocation7 + $0x4a]]
        %s294 = sld [smem:[#allocation7 + $0x4b]]
        %s295 = sld [smem:[#allocation7 + $0x4c]]
        %s296 = sld [smem:[#allocation7 + $0x4d]]
        %s297 = sld [smem:[#allocation7 + $0x4e]]
        %s298 = sld [smem:[#allocation7 + $0x4f]]
        %s299 = sld [smem:[#allocation7 + $0x50]]
        %v300 = vlaneseq
        %v301 = vand.u32 %v300, 127
        %vm302 = vcmp.ge.s32.totalorder %v301, 8
        %v303 = vsub.s32 %v301, 8
        %vm304 = vcmp.lt.s32.totalorder %v303, 0
        %v305 = vsub.s32 0, %v303
        %v306 = vsel %vm304, %v305, %v303
        %v307 = vshrl.u32 %v306, 1
        %v308 = vand.u32 %v306, 1
        %v309 = vsub.s32 0, %v308
        %v310 = vsel %vm304, %v309, %v308
        %vm311 = vcmp.ne.s32.totalorder %v310, 0
        %vm312 = vcmp.lt.s32.totalorder %v310, 0
        %vm313 = vmand %vm312, %vm311
        %v314 = vadd.s32 %v310, 2
        %v315 = vsel %vm313, %v314, %v310
        %vm316 = vcmp.eq.s32.totalorder %v315, 0
        %vm317 = vmand %vm302, %vm316
        %vm318 = vcmask 277504
        %319 = vst.msk [vmem:[#allocation2] sm:$0xff] %vm318, 0.0
        %320 = vst.msk [vmem:[#allocation2 + $0x8] sm:$0xff] %vm318, 0.0
        %321 = vst.msk [vmem:[#allocation2 + $0x10] sm:$0xff] %vm318, 0.0
        %322 = vst.msk [vmem:[#allocation2 + $0x18] sm:$0xff] %vm318, 0.0
        %vm323 = vcmask 271360
        %324 = vst.msk [vmem:[#allocation2 + $0x20] sm:$0x3] %vm323, 0.0
        %325 = vst.msk [vmem:[#allocation2 + $0x28] sm:$0xff] %vm318, 0.0
        %326 = vst.msk [vmem:[#allocation2 + $0x30] sm:$0xff] %vm318, 0.0
        %327 = vst.msk [vmem:[#allocation2 + $0x38] sm:$0xff] %vm318, 0.0
        %328 = vst.msk [vmem:[#allocation2 + $0x40] sm:$0xff] %vm318, 0.0
        %329 = vst.msk [vmem:[#allocation2 + $0x48] sm:$0x3] %vm323, 0.0
        %330 = vst.msk [vmem:[#allocation2 + $0x50] sm:$0xff] %vm318, 0.0
        %331 = vst.msk [vmem:[#allocation2 + $0x58] sm:$0xff] %vm318, 0.0
        %332 = vst.msk [vmem:[#allocation2 + $0x60] sm:$0xff] %vm318, 0.0
        %333 = vst.msk [vmem:[#allocation2 + $0x68] sm:$0xff] %vm318, 0.0
        %334 = vst.msk [vmem:[#allocation2 + $0x70] sm:$0x3] %vm323, 0.0
        %v335 = vld [vmem:[%s184] sm:$0xff]
        %v336 = vld [vmem:[%s184 + $0x8] sm:$0xff]
        %v337 = vld [vmem:[%s184 + $0x10] sm:$0xff]
        %v338 = vld [vmem:[%s184 + $0x18] sm:$0xff]
        %v339 = vld [vmem:[%s184 + $0x20] sm:$0xff]
        %v340 = vld [vmem:[%s184 + $0x28] sm:$0xff]
        %v341 = vld [vmem:[%s184 + $0x30] sm:$0xff]
        %v342 = vld [vmem:[%s184 + $0x38] sm:$0xff]
        %v343 = vld [vmem:[%s184 + $0x40] sm:$0xff]
        %v344 = vld [vmem:[%s184 + $0x48] sm:$0xff]
        %v345 = vld [vmem:[%s184 + $0x50] sm:$0xff]
        %v346 = vld [vmem:[%s184 + $0x58] sm:$0xff]
        %359 = vrot.lane.b32.xlu0 %v335, 1
        %v360 = vpop.permute.xlu0 %359
        %361 = vrot.lane.b32.xlu0 %v336, 1
        %v362 = vpop.permute.xlu0 %361
        %363 = vrot.lane.b32.xlu0 %v337, 1
        %v364 = vpop.permute.xlu0 %363
        %365 = vrot.lane.b32.xlu0 %v338, 1
        %v366 = vpop.permute.xlu0 %365
        %367 = vrot.lane.b32.xlu0 %v339, 1
        %v368 = vpop.permute.xlu0 %367
        %369 = vrot.lane.b32.xlu0 %v340, 1
        %v370 = vpop.permute.xlu0 %369
        %371 = vrot.lane.b32.xlu0 %v341, 1
        %v372 = vpop.permute.xlu0 %371
        %373 = vrot.lane.b32.xlu0 %v342, 1
        %v374 = vpop.permute.xlu0 %373
        %375 = vrot.lane.b32.xlu0 %v343, 1
        %v376 = vpop.permute.xlu0 %375
        %377 = vrot.lane.b32.xlu0 %v344, 1
        %v378 = vpop.permute.xlu0 %377
        %379 = vrot.lane.b32.xlu0 %v345, 1
        %v380 = vpop.permute.xlu0 %379
        %381 = vrot.lane.b32.xlu0 %v346, 1
        %v382 = vpop.permute.xlu0 %381
        %vm395 = vcmask 269320
        %396 = vst.msk [vmem:[#allocation2 + $0x1] sm:$0xff] %vm395, %v360
        %397 = vst.msk [vmem:[#allocation2 + $0x9] sm:$0xff] %vm395, %v362
        %398 = vst.msk [vmem:[#allocation2 + $0x11] sm:$0xff] %vm395, %v364
        %399 = vst.msk [vmem:[#allocation2 + $0x19] sm:$0xff] %vm395, %v366
        %400 = vst.msk [vmem:[#allocation2 + $0x29] sm:$0xff] %vm395, %v368
        %401 = vst.msk [vmem:[#allocation2 + $0x31] sm:$0xff] %vm395, %v370
        %402 = vst.msk [vmem:[#allocation2 + $0x39] sm:$0xff] %vm395, %v372
        %403 = vst.msk [vmem:[#allocation2 + $0x41] sm:$0xff] %vm395, %v374
        %404 = vst.msk [vmem:[#allocation2 + $0x51] sm:$0xff] %vm395, %v376
        %405 = vst.msk [vmem:[#allocation2 + $0x59] sm:$0xff] %vm395, %v378
        %406 = vst.msk [vmem:[#allocation2 + $0x61] sm:$0xff] %vm395, %v380
        %407 = vst.msk [vmem:[#allocation2 + $0x69] sm:$0xff] %vm395, %v382
        %v408 = vstv %s216
        %v409 = vstv %s217
        %v410 = vstv %s218
        %v411 = vld [vmem:[#allocation2] sm:$0xff]
        %v412 = vld [vmem:[#allocation2 + $0x8] sm:$0xff]
        %v413 = vld [vmem:[#allocation2 + $0x10] sm:$0xff]
        %v414 = vld [vmem:[#allocation2 + $0x18] sm:$0xff]
        %v415 = vld [vmem:[#allocation2 + $0x20] sm:$0x3]
        %v416 = vstv %s219
        %v417 = vmul.f32 %v416, %v411
        %v418 = vmul.f32 %v416, %v412
        %v419 = vmul.f32 %v416, %v413
        %v420 = vmul.f32 %v416, %v414
        %v421 = vadd.f32 %v408, %v417
        %v422 = vadd.f32 %v408, %v418
        %v423 = vadd.f32 %v408, %v419
        %v424 = vadd.f32 %v408, %v420
        %v425 = vstv %s246
        %v426 = vmul.f32 %v425, %v411
        %v427 = vmul.f32 %v425, %v412
        %v428 = vmul.f32 %v425, %v413
        %v429 = vmul.f32 %v425, %v414
        %v430 = vadd.f32 %v409, %v426
        %v431 = vadd.f32 %v409, %v427
        %v432 = vadd.f32 %v409, %v428
        %v433 = vadd.f32 %v409, %v429
        %v434 = vstv %s273
        %v435 = vmul.f32 %v434, %v411
        %v436 = vmul.f32 %v434, %v412
        %v437 = vmul.f32 %v434, %v413
        %v438 = vmul.f32 %v434, %v414
        %v439 = vadd.f32 %v410, %v435
        %v440 = vadd.f32 %v410, %v436
        %v441 = vadd.f32 %v410, %v437
        %v442 = vadd.f32 %v410, %v438
        %v443 = vstv %s220
        %v444 = vmul.f32 %v443, %v411
        %v445 = vmul.f32 %v443, %v412
        %v446 = vmul.f32 %v443, %v413
        %v447 = vmul.f32 %v443, %v414
        %452 = vrot.lane.b32.xlu0 %v444, 127
        %v453 = vpop.permute.xlu0 %452
        %454 = vrot.lane.b32.xlu0 %v445, 127
        %v455 = vpop.permute.xlu0 %454
        %456 = vrot.lane.b32.xlu0 %v446, 127
        %v457 = vpop.permute.xlu0 %456
        %458 = vrot.lane.b32.xlu0 %v447, 127
        %v459 = vpop.permute.xlu0 %458
        %v464 = vadd.f32 %v421, %v453
        %v465 = vadd.f32 %v422, %v455
        %v466 = vadd.f32 %v423, %v457
        %v467 = vadd.f32 %v424, %v459
        %v468 = vstv %s247
        %v469 = vmul.f32 %v468, %v411
        %v470 = vmul.f32 %v468, %v412
        %v471 = vmul.f32 %v468, %v413
        %v472 = vmul.f32 %v468, %v414
        %477 = vrot.lane.b32.xlu0 %v469, 127
        %v478 = vpop.permute.xlu0 %477
        %479 = vrot.lane.b32.xlu0 %v470, 127
        %v480 = vpop.permute.xlu0 %479
        %481 = vrot.lane.b32.xlu0 %v471, 127
        %v482 = vpop.permute.xlu0 %481
        %483 = vrot.lane.b32.xlu0 %v472, 127
        %v484 = vpop.permute.xlu0 %483
        %v489 = vadd.f32 %v430, %v478
        %v490 = vadd.f32 %v431, %v480
        %v491 = vadd.f32 %v432, %v482
        %v492 = vadd.f32 %v433, %v484
        %v493 = vstv %s274
        %v494 = vmul.f32 %v493, %v411
        %v495 = vmul.f32 %v493, %v412
        %v496 = vmul.f32 %v493, %v413
        %v497 = vmul.f32 %v493, %v414
        %502 = vrot.lane.b32.xlu0 %v494, 127
        %v503 = vpop.permute.xlu0 %502
        %504 = vrot.lane.b32.xlu0 %v495, 127
        %v505 = vpop.permute.xlu0 %504
        %506 = vrot.lane.b32.xlu0 %v496, 127
        %v507 = vpop.permute.xlu0 %506
        %508 = vrot.lane.b32.xlu0 %v497, 127
        %v509 = vpop.permute.xlu0 %508
        %v514 = vadd.f32 %v439, %v503
        %v515 = vadd.f32 %v440, %v505
        %v516 = vadd.f32 %v441, %v507
        %v517 = vadd.f32 %v442, %v509
        %v518 = vstv %s221
        %v519 = vmul.f32 %v518, %v411
        %v520 = vmul.f32 %v518, %v412
        %v521 = vmul.f32 %v518, %v413
        %v522 = vmul.f32 %v518, %v414
        %527 = vrot.lane.b32.xlu0 %v519, 126
        %v528 = vpop.permute.xlu0 %527
        %529 = vrot.lane.b32.xlu0 %v520, 126
        %v530 = vpop.permute.xlu0 %529
        %531 = vrot.lane.b32.xlu0 %v521, 126
        %v532 = vpop.permute.xlu0 %531
        %533 = vrot.lane.b32.xlu0 %v522, 126
        %v534 = vpop.permute.xlu0 %533
        %v539 = vadd.f32 %v464, %v528
        %v540 = vadd.f32 %v465, %v530
        %v541 = vadd.f32 %v466, %v532
        %v542 = vadd.f32 %v467, %v534
        %v543 = vstv %s248
        %v544 = vmul.f32 %v543, %v411
        %v545 = vmul.f32 %v543, %v412
        %v546 = vmul.f32 %v543, %v413
        %v547 = vmul.f32 %v543, %v414
        %552 = vrot.lane.b32.xlu0 %v544, 126
        %v553 = vpop.permute.xlu0 %552
        %554 = vrot.lane.b32.xlu0 %v545, 126
        %v555 = vpop.permute.xlu0 %554
        %556 = vrot.lane.b32.xlu0 %v546, 126
        %v557 = vpop.permute.xlu0 %556
        %558 = vrot.lane.b32.xlu0 %v547, 126
        %v559 = vpop.permute.xlu0 %558
        %v564 = vadd.f32 %v489, %v553
        %v565 = vadd.f32 %v490, %v555
        %v566 = vadd.f32 %v491, %v557
        %v567 = vadd.f32 %v492, %v559
        %v568 = vstv %s275
        %v569 = vmul.f32 %v568, %v411
        %v570 = vmul.f32 %v568, %v412
        %v571 = vmul.f32 %v568, %v413
        %v572 = vmul.f32 %v568, %v414
        %577 = vrot.lane.b32.xlu0 %v569, 126
        %v578 = vpop.permute.xlu0 %577
        %579 = vrot.lane.b32.xlu0 %v570, 126
        %v580 = vpop.permute.xlu0 %579
        %581 = vrot.lane.b32.xlu0 %v571, 126
        %v582 = vpop.permute.xlu0 %581
        %583 = vrot.lane.b32.xlu0 %v572, 126
        %v584 = vpop.permute.xlu0 %583
        %v589 = vadd.f32 %v514, %v578
        %v590 = vadd.f32 %v515, %v580
        %v591 = vadd.f32 %v516, %v582
        %v592 = vadd.f32 %v517, %v584
        %v593 = vstv %s222
        %v594 = vmul.f32 %v593, %v411
        %v595 = vmul.f32 %v593, %v412
        %v596 = vmul.f32 %v593, %v413
        %v597 = vmul.f32 %v593, %v414
        %v598 = vmul.f32 %v593, %v415
        %vm604 = vcmask 1046528
        %v605 = vrot.slane %v594, 1
        %v606 = vrot.slane %v595, 1
        %v607 = vsel %vm604, %v605, %v606
        %v608 = vrot.slane %v596, 1
        %v609 = vsel %vm604, %v606, %v608
        %v610 = vrot.slane %v597, 1
        %v611 = vsel %vm604, %v608, %v610
        %v612 = vrot.slane %v598, 1
        %v613 = vsel %vm604, %v610, %v612
        %v618 = vadd.f32 %v539, %v607
        %v619 = vadd.f32 %v540, %v609
        %v620 = vadd.f32 %v541, %v611
        %v621 = vadd.f32 %v542, %v613
        %v622 = vstv %s249
        %v623 = vmul.f32 %v622, %v411
        %v624 = vmul.f32 %v622, %v412
        %v625 = vmul.f32 %v622, %v413
        %v626 = vmul.f32 %v622, %v414
        %v627 = vmul.f32 %v622, %v415
        %v633 = vrot.slane %v623, 1
        %v634 = vrot.slane %v624, 1
        %v635 = vsel %vm604, %v633, %v634
        %v636 = vrot.slane %v625, 1
        %v637 = vsel %vm604, %v634, %v636
        %v638 = vrot.slane %v626, 1
        %v639 = vsel %vm604, %v636, %v638
        %v640 = vrot.slane %v627, 1
        %v641 = vsel %vm604, %v638, %v640
        %v646 = vadd.f32 %v564, %v635
        %v647 = vadd.f32 %v565, %v637
        %v648 = vadd.f32 %v566, %v639
        %v649 = vadd.f32 %v567, %v641
        %v650 = vstv %s276
        %v651 = vmul.f32 %v650, %v411
        %v652 = vmul.f32 %v650, %v412
        %v653 = vmul.f32 %v650, %v413
        %v654 = vmul.f32 %v650, %v414
        %v655 = vmul.f32 %v650, %v415
        %v661 = vrot.slane %v651, 1
        %v662 = vrot.slane %v652, 1
        %v663 = vsel %vm604, %v661, %v662
        %v664 = vrot.slane %v653, 1
        %v665 = vsel %vm604, %v662, %v664
        %v666 = vrot.slane %v654, 1
        %v667 = vsel %vm604, %v664, %v666
        %v668 = vrot.slane %v655, 1
        %v669 = vsel %vm604, %v666, %v668
        %v674 = vadd.f32 %v589, %v663
        %v675 = vadd.f32 %v590, %v665
        %v676 = vadd.f32 %v591, %v667
        %v677 = vadd.f32 %v592, %v669
        %v678 = vstv %s223
        %v679 = vmul.f32 %v678, %v411
        %v680 = vmul.f32 %v678, %v412
        %v681 = vmul.f32 %v678, %v413
        %v682 = vmul.f32 %v678, %v414
        %v683 = vmul.f32 %v678, %v415
        %v689 = vrot.slane %v679, 1
        %v690 = vrot.slane %v680, 1
        %v691 = vsel %vm604, %v689, %v690
        %v692 = vrot.slane %v681, 1
        %v693 = vsel %vm604, %v690, %v692
        %v694 = vrot.slane %v682, 1
        %v695 = vsel %vm604, %v692, %v694
        %v696 = vrot.slane %v683, 1
        %v697 = vsel %vm604, %v694, %v696
        %698 = vrot.lane.b32.xlu0 %v691, 127
        %v699 = vpop.permute.xlu0 %698
        %700 = vrot.lane.b32.xlu0 %v693, 127
        %v701 = vpop.permute.xlu0 %700
        %702 = vrot.lane.b32.xlu0 %v695, 127
        %v703 = vpop.permute.xlu0 %702
        %704 = vrot.lane.b32.xlu0 %v697, 127
        %v705 = vpop.permute.xlu0 %704
        %v710 = vadd.f32 %v618, %v699
        %v711 = vadd.f32 %v619, %v701
        %v712 = vadd.f32 %v620, %v703
        %v713 = vadd.f32 %v621, %v705
        %v714 = vstv %s250
        %v715 = vmul.f32 %v714, %v411
        %v716 = vmul.f32 %v714, %v412
        %v717 = vmul.f32 %v714, %v413
        %v718 = vmul.f32 %v714, %v414
        %v719 = vmul.f32 %v714, %v415
        %v725 = vrot.slane %v715, 1
        %v726 = vrot.slane %v716, 1
        %v727 = vsel %vm604, %v725, %v726
        %v728 = vrot.slane %v717, 1
        %v729 = vsel %vm604, %v726, %v728
        %v730 = vrot.slane %v718, 1
        %v731 = vsel %vm604, %v728, %v730
        %v732 = vrot.slane %v719, 1
        %v733 = vsel %vm604, %v730, %v732
        %734 = vrot.lane.b32.xlu0 %v727, 127
        %v735 = vpop.permute.xlu0 %734
        %736 = vrot.lane.b32.xlu0 %v729, 127
        %v737 = vpop.permute.xlu0 %736
        %738 = vrot.lane.b32.xlu0 %v731, 127
        %v739 = vpop.permute.xlu0 %738
        %740 = vrot.lane.b32.xlu0 %v733, 127
        %v741 = vpop.permute.xlu0 %740
        %v746 = vadd.f32 %v646, %v735
        %v747 = vadd.f32 %v647, %v737
        %v748 = vadd.f32 %v648, %v739
        %v749 = vadd.f32 %v649, %v741
        %v750 = vstv %s277
        %v751 = vmul.f32 %v750, %v411
        %v752 = vmul.f32 %v750, %v412
        %v753 = vmul.f32 %v750, %v413
        %v754 = vmul.f32 %v750, %v414
        %v755 = vmul.f32 %v750, %v415
        %v761 = vrot.slane %v751, 1
        %v762 = vrot.slane %v752, 1
        %v763 = vsel %vm604, %v761, %v762
        %v764 = vrot.slane %v753, 1
        %v765 = vsel %vm604, %v762, %v764
        %v766 = vrot.slane %v754, 1
        %v767 = vsel %vm604, %v764, %v766
        %v768 = vrot.slane %v755, 1
        %v769 = vsel %vm604, %v766, %v768
        %770 = vrot.lane.b32.xlu0 %v763, 127
        %v771 = vpop.permute.xlu0 %770
        %772 = vrot.lane.b32.xlu0 %v765, 127
        %v773 = vpop.permute.xlu0 %772
        %774 = vrot.lane.b32.xlu0 %v767, 127
        %v775 = vpop.permute.xlu0 %774
        %776 = vrot.lane.b32.xlu0 %v769, 127
        %v777 = vpop.permute.xlu0 %776
        %v782 = vadd.f32 %v674, %v771
        %v783 = vadd.f32 %v675, %v773
        %v784 = vadd.f32 %v676, %v775
        %v785 = vadd.f32 %v677, %v777
        %v786 = vstv %s224
        %v787 = vmul.f32 %v786, %v411
        %v788 = vmul.f32 %v786, %v412
        %v789 = vmul.f32 %v786, %v413
        %v790 = vmul.f32 %v786, %v414
        %v791 = vmul.f32 %v786, %v415
        %v797 = vrot.slane %v787, 1
        %v798 = vrot.slane %v788, 1
        %v799 = vsel %vm604, %v797, %v798
        %v800 = vrot.slane %v789, 1
        %v801 = vsel %vm604, %v798, %v800
        %v802 = vrot.slane %v790, 1
        %v803 = vsel %vm604, %v800, %v802
        %v804 = vrot.slane %v791, 1
        %v805 = vsel %vm604, %v802, %v804
        %806 = vrot.lane.b32.xlu0 %v799, 126
        %v807 = vpop.permute.xlu0 %806
        %808 = vrot.lane.b32.xlu0 %v801, 126
        %v809 = vpop.permute.xlu0 %808
        %810 = vrot.lane.b32.xlu0 %v803, 126
        %v811 = vpop.permute.xlu0 %810
        %812 = vrot.lane.b32.xlu0 %v805, 126
        %v813 = vpop.permute.xlu0 %812
        %v818 = vadd.f32 %v710, %v807
        %v819 = vadd.f32 %v711, %v809
        %v820 = vadd.f32 %v712, %v811
        %v821 = vadd.f32 %v713, %v813
        %v822 = vstv %s251
        %v823 = vmul.f32 %v822, %v411
        %v824 = vmul.f32 %v822, %v412
        %v825 = vmul.f32 %v822, %v413
        %v826 = vmul.f32 %v822, %v414
        %v827 = vmul.f32 %v822, %v415
        %v833 = vrot.slane %v823, 1
        %v834 = vrot.slane %v824, 1
        %v835 = vsel %vm604, %v833, %v834
        %v836 = vrot.slane %v825, 1
        %v837 = vsel %vm604, %v834, %v836
        %v838 = vrot.slane %v826, 1
        %v839 = vsel %vm604, %v836, %v838
        %v840 = vrot.slane %v827, 1
        %v841 = vsel %vm604, %v838, %v840
        %842 = vrot.lane.b32.xlu0 %v835, 126
        %v843 = vpop.permute.xlu0 %842
        %844 = vrot.lane.b32.xlu0 %v837, 126
        %v845 = vpop.permute.xlu0 %844
        %846 = vrot.lane.b32.xlu0 %v839, 126
        %v847 = vpop.permute.xlu0 %846
        %848 = vrot.lane.b32.xlu0 %v841, 126
        %v849 = vpop.permute.xlu0 %848
        %v854 = vadd.f32 %v746, %v843
        %v855 = vadd.f32 %v747, %v845
        %v856 = vadd.f32 %v748, %v847
        %v857 = vadd.f32 %v749, %v849
        %v858 = vstv %s278
        %v859 = vmul.f32 %v858, %v411
        %v860 = vmul.f32 %v858, %v412
        %v861 = vmul.f32 %v858, %v413
        %v862 = vmul.f32 %v858, %v414
        %v863 = vmul.f32 %v858, %v415
        %v869 = vrot.slane %v859, 1
        %v870 = vrot.slane %v860, 1
        %v871 = vsel %vm604, %v869, %v870
        %v872 = vrot.slane %v861, 1
        %v873 = vsel %vm604, %v870, %v872
        %v874 = vrot.slane %v862, 1
        %v875 = vsel %vm604, %v872, %v874
        %v876 = vrot.slane %v863, 1
        %v877 = vsel %vm604, %v874, %v876
        %878 = vrot.lane.b32.xlu0 %v871, 126
        %v879 = vpop.permute.xlu0 %878
        %880 = vrot.lane.b32.xlu0 %v873, 126
        %v881 = vpop.permute.xlu0 %880
        %882 = vrot.lane.b32.xlu0 %v875, 126
        %v883 = vpop.permute.xlu0 %882
        %884 = vrot.lane.b32.xlu0 %v877, 126
        %v885 = vpop.permute.xlu0 %884
        %v890 = vadd.f32 %v782, %v879
        %v891 = vadd.f32 %v783, %v881
        %v892 = vadd.f32 %v784, %v883
        %v893 = vadd.f32 %v785, %v885
        %v894 = vstv %s225
        %v895 = vmul.f32 %v894, %v411
        %v896 = vmul.f32 %v894, %v412
        %v897 = vmul.f32 %v894, %v413
        %v898 = vmul.f32 %v894, %v414
        %v899 = vmul.f32 %v894, %v415
        %vm905 = vcmask 1045504
        %v906 = vrot.slane %v895, 2
        %v907 = vrot.slane %v896, 2
        %v908 = vsel %vm905, %v906, %v907
        %v909 = vrot.slane %v897, 2
        %v910 = vsel %vm905, %v907, %v909
        %v911 = vrot.slane %v898, 2
        %v912 = vsel %vm905, %v909, %v911
        %v913 = vrot.slane %v899, 2
        %v914 = vsel %vm905, %v911, %v913
        %v919 = vadd.f32 %v818, %v908
        %v920 = vadd.f32 %v819, %v910
        %v921 = vadd.f32 %v820, %v912
        %v922 = vadd.f32 %v821, %v914
        %v923 = vstv %s252
        %v924 = vmul.f32 %v923, %v411
        %v925 = vmul.f32 %v923, %v412
        %v926 = vmul.f32 %v923, %v413
        %v927 = vmul.f32 %v923, %v414
        %v928 = vmul.f32 %v923, %v415
        %v934 = vrot.slane %v924, 2
        %v935 = vrot.slane %v925, 2
        %v936 = vsel %vm905, %v934, %v935
        %v937 = vrot.slane %v926, 2
        %v938 = vsel %vm905, %v935, %v937
        %v939 = vrot.slane %v927, 2
        %v940 = vsel %vm905, %v937, %v939
        %v941 = vrot.slane %v928, 2
        %v942 = vsel %vm905, %v939, %v941
        %v947 = vadd.f32 %v854, %v936
        %v948 = vadd.f32 %v855, %v938
        %v949 = vadd.f32 %v856, %v940
        %v950 = vadd.f32 %v857, %v942
        %v951 = vstv %s279
        %v952 = vmul.f32 %v951, %v411
        %v953 = vmul.f32 %v951, %v412
        %v954 = vmul.f32 %v951, %v413
        %v955 = vmul.f32 %v951, %v414
        %v956 = vmul.f32 %v951, %v415
        %v962 = vrot.slane %v952, 2
        %v963 = vrot.slane %v953, 2
        %v964 = vsel %vm905, %v962, %v963
        %v965 = vrot.slane %v954, 2
        %v966 = vsel %vm905, %v963, %v965
        %v967 = vrot.slane %v955, 2
        %v968 = vsel %vm905, %v965, %v967
        %v969 = vrot.slane %v956, 2
        %v970 = vsel %vm905, %v967, %v969
        %v975 = vadd.f32 %v890, %v964
        %v976 = vadd.f32 %v891, %v966
        %v977 = vadd.f32 %v892, %v968
        %v978 = vadd.f32 %v893, %v970
        %v979 = vstv %s226
        %v980 = vmul.f32 %v979, %v411
        %v981 = vmul.f32 %v979, %v412
        %v982 = vmul.f32 %v979, %v413
        %v983 = vmul.f32 %v979, %v414
        %v984 = vmul.f32 %v979, %v415
        %v990 = vrot.slane %v980, 2
        %v991 = vrot.slane %v981, 2
        %v992 = vsel %vm905, %v990, %v991
        %v993 = vrot.slane %v982, 2
        %v994 = vsel %vm905, %v991, %v993
        %v995 = vrot.slane %v983, 2
        %v996 = vsel %vm905, %v993, %v995
        %v997 = vrot.slane %v984, 2
        %v998 = vsel %vm905, %v995, %v997
        %999 = vrot.lane.b32.xlu0 %v992, 127
        %v1000 = vpop.permute.xlu0 %999
        %1001 = vrot.lane.b32.xlu0 %v994, 127
        %v1002 = vpop.permute.xlu0 %1001
        %1003 = vrot.lane.b32.xlu0 %v996, 127
        %v1004 = vpop.permute.xlu0 %1003
        %1005 = vrot.lane.b32.xlu0 %v998, 127
        %v1006 = vpop.permute.xlu0 %1005
        %v1011 = vadd.f32 %v919, %v1000
        %v1012 = vadd.f32 %v920, %v1002
        %v1013 = vadd.f32 %v921, %v1004
        %v1014 = vadd.f32 %v922, %v1006
        %v1015 = vstv %s253
        %v1016 = vmul.f32 %v1015, %v411
        %v1017 = vmul.f32 %v1015, %v412
        %v1018 = vmul.f32 %v1015, %v413
        %v1019 = vmul.f32 %v1015, %v414
        %v1020 = vmul.f32 %v1015, %v415
        %v1026 = vrot.slane %v1016, 2
        %v1027 = vrot.slane %v1017, 2
        %v1028 = vsel %vm905, %v1026, %v1027
        %v1029 = vrot.slane %v1018, 2
        %v1030 = vsel %vm905, %v1027, %v1029
        %v1031 = vrot.slane %v1019, 2
        %v1032 = vsel %vm905, %v1029, %v1031
        %v1033 = vrot.slane %v1020, 2
        %v1034 = vsel %vm905, %v1031, %v1033
        %1035 = vrot.lane.b32.xlu0 %v1028, 127
        %v1036 = vpop.permute.xlu0 %1035
        %1037 = vrot.lane.b32.xlu0 %v1030, 127
        %v1038 = vpop.permute.xlu0 %1037
        %1039 = vrot.lane.b32.xlu0 %v1032, 127
        %v1040 = vpop.permute.xlu0 %1039
        %1041 = vrot.lane.b32.xlu0 %v1034, 127
        %v1042 = vpop.permute.xlu0 %1041
        %v1047 = vadd.f32 %v947, %v1036
        %v1048 = vadd.f32 %v948, %v1038
        %v1049 = vadd.f32 %v949, %v1040
        %v1050 = vadd.f32 %v950, %v1042
        %v1051 = vstv %s280
        %v1052 = vmul.f32 %v1051, %v411
        %v1053 = vmul.f32 %v1051, %v412
        %v1054 = vmul.f32 %v1051, %v413
        %v1055 = vmul.f32 %v1051, %v414
        %v1056 = vmul.f32 %v1051, %v415
        %v1062 = vrot.slane %v1052, 2
        %v1063 = vrot.slane %v1053, 2
        %v1064 = vsel %vm905, %v1062, %v1063
        %v1065 = vrot.slane %v1054, 2
        %v1066 = vsel %vm905, %v1063, %v1065
        %v1067 = vrot.slane %v1055, 2
        %v1068 = vsel %vm905, %v1065, %v1067
        %v1069 = vrot.slane %v1056, 2
        %v1070 = vsel %vm905, %v1067, %v1069
        %1071 = vrot.lane.b32.xlu0 %v1064, 127
        %v1072 = vpop.permute.xlu0 %1071
        %1073 = vrot.lane.b32.xlu0 %v1066, 127
        %v1074 = vpop.permute.xlu0 %1073
        %1075 = vrot.lane.b32.xlu0 %v1068, 127
        %v1076 = vpop.permute.xlu0 %1075
        %1077 = vrot.lane.b32.xlu0 %v1070, 127
        %v1078 = vpop.permute.xlu0 %1077
        %v1083 = vadd.f32 %v975, %v1072
        %v1084 = vadd.f32 %v976, %v1074
        %v1085 = vadd.f32 %v977, %v1076
        %v1086 = vadd.f32 %v978, %v1078
        %v1087 = vstv %s227
        %v1088 = vmul.f32 %v1087, %v411
        %v1089 = vmul.f32 %v1087, %v412
        %v1090 = vmul.f32 %v1087, %v413
        %v1091 = vmul.f32 %v1087, %v414
        %v1092 = vmul.f32 %v1087, %v415
        %v1098 = vrot.slane %v1088, 2
        %v1099 = vrot.slane %v1089, 2
        %v1100 = vsel %vm905, %v1098, %v1099
        %v1101 = vrot.slane %v1090, 2
        %v1102 = vsel %vm905, %v1099, %v1101
        %v1103 = vrot.slane %v1091, 2
        %v1104 = vsel %vm905, %v1101, %v1103
        %v1105 = vrot.slane %v1092, 2
        %v1106 = vsel %vm905, %v1103, %v1105
        %1107 = vrot.lane.b32.xlu0 %v1100, 126
        %v1108 = vpop.permute.xlu0 %1107
        %1109 = vrot.lane.b32.xlu0 %v1102, 126
        %v1110 = vpop.permute.xlu0 %1109
        %1111 = vrot.lane.b32.xlu0 %v1104, 126
        %v1112 = vpop.permute.xlu0 %1111
        %1113 = vrot.lane.b32.xlu0 %v1106, 126
        %v1114 = vpop.permute.xlu0 %1113
        %v1119 = vadd.f32 %v1011, %v1108
        %v1120 = vadd.f32 %v1012, %v1110
        %v1121 = vadd.f32 %v1013, %v1112
        %v1122 = vadd.f32 %v1014, %v1114
        %v1123 = vstv %s254
        %v1124 = vmul.f32 %v1123, %v411
        %v1125 = vmul.f32 %v1123, %v412
        %v1126 = vmul.f32 %v1123, %v413
        %v1127 = vmul.f32 %v1123, %v414
        %v1128 = vmul.f32 %v1123, %v415
        %v1134 = vrot.slane %v1124, 2
        %v1135 = vrot.slane %v1125, 2
        %v1136 = vsel %vm905, %v1134, %v1135
        %v1137 = vrot.slane %v1126, 2
        %v1138 = vsel %vm905, %v1135, %v1137
        %v1139 = vrot.slane %v1127, 2
        %v1140 = vsel %vm905, %v1137, %v1139
        %v1141 = vrot.slane %v1128, 2
        %v1142 = vsel %vm905, %v1139, %v1141
        %1143 = vrot.lane.b32.xlu0 %v1136, 126
        %v1144 = vpop.permute.xlu0 %1143
        %1145 = vrot.lane.b32.xlu0 %v1138, 126
        %v1146 = vpop.permute.xlu0 %1145
        %1147 = vrot.lane.b32.xlu0 %v1140, 126
        %v1148 = vpop.permute.xlu0 %1147
        %1149 = vrot.lane.b32.xlu0 %v1142, 126
        %v1150 = vpop.permute.xlu0 %1149
        %v1155 = vadd.f32 %v1047, %v1144
        %v1156 = vadd.f32 %v1048, %v1146
        %v1157 = vadd.f32 %v1049, %v1148
        %v1158 = vadd.f32 %v1050, %v1150
        %v1159 = vstv %s281
        %v1160 = vmul.f32 %v1159, %v411
        %v1161 = vmul.f32 %v1159, %v412
        %v1162 = vmul.f32 %v1159, %v413
        %v1163 = vmul.f32 %v1159, %v414
        %v1164 = vmul.f32 %v1159, %v415
        %v1170 = vrot.slane %v1160, 2
        %v1171 = vrot.slane %v1161, 2
        %v1172 = vsel %vm905, %v1170, %v1171
        %v1173 = vrot.slane %v1162, 2
        %v1174 = vsel %vm905, %v1171, %v1173
        %v1175 = vrot.slane %v1163, 2
        %v1176 = vsel %vm905, %v1173, %v1175
        %v1177 = vrot.slane %v1164, 2
        %v1178 = vsel %vm905, %v1175, %v1177
        %1179 = vrot.lane.b32.xlu0 %v1172, 126
        %v1180 = vpop.permute.xlu0 %1179
        %1181 = vrot.lane.b32.xlu0 %v1174, 126
        %v1182 = vpop.permute.xlu0 %1181
        %1183 = vrot.lane.b32.xlu0 %v1176, 126
        %v1184 = vpop.permute.xlu0 %1183
        %1185 = vrot.lane.b32.xlu0 %v1178, 126
        %v1186 = vpop.permute.xlu0 %1185
        %v1191 = vadd.f32 %v1083, %v1180
        %v1192 = vadd.f32 %v1084, %v1182
        %v1193 = vadd.f32 %v1085, %v1184
        %v1194 = vadd.f32 %v1086, %v1186
        %s1195 = scalar_lea.vmem [#allocation2], 40
        %v1196 = vld [vmem:[%s1195] sm:$0xff]
        %v1197 = vld [vmem:[%s1195 + $0x8] sm:$0xff]
        %v1198 = vld [vmem:[%s1195 + $0x10] sm:$0xff]
        %v1199 = vld [vmem:[%s1195 + $0x18] sm:$0xff]
        %v1200 = vld [vmem:[%s1195 + $0x20] sm:$0x3]
        %v1201 = vstv %s228
        %v1202 = vmul.f32 %v1201, %v1196
        %v1203 = vmul.f32 %v1201, %v1197
        %v1204 = vmul.f32 %v1201, %v1198
        %v1205 = vmul.f32 %v1201, %v1199
        %v1206 = vadd.f32 %v1119, %v1202
        %v1207 = vadd.f32 %v1120, %v1203
        %v1208 = vadd.f32 %v1121, %v1204
        %v1209 = vadd.f32 %v1122, %v1205
        %v1210 = vstv %s255
        %v1211 = vmul.f32 %v1210, %v1196
        %v1212 = vmul.f32 %v1210, %v1197
        %v1213 = vmul.f32 %v1210, %v1198
        %v1214 = vmul.f32 %v1210, %v1199
        %v1215 = vadd.f32 %v1155, %v1211
        %v1216 = vadd.f32 %v1156, %v1212
        %v1217 = vadd.f32 %v1157, %v1213
        %v1218 = vadd.f32 %v1158, %v1214
        %v1219 = vstv %s282
        %v1220 = vmul.f32 %v1219, %v1196
        %v1221 = vmul.f32 %v1219, %v1197
        %v1222 = vmul.f32 %v1219, %v1198
        %v1223 = vmul.f32 %v1219, %v1199
        %v1224 = vadd.f32 %v1191, %v1220
        %v1225 = vadd.f32 %v1192, %v1221
        %v1226 = vadd.f32 %v1193, %v1222
        %v1227 = vadd.f32 %v1194, %v1223
        %v1228 = vstv %s229
        %v1229 = vmul.f32 %v1228, %v1196
        %v1230 = vmul.f32 %v1228, %v1197
        %v1231 = vmul.f32 %v1228, %v1198
        %v1232 = vmul.f32 %v1228, %v1199
        %1237 = vrot.lane.b32.xlu0 %v1229, 127
        %v1238 = vpop.permute.xlu0 %1237
        %1239 = vrot.lane.b32.xlu0 %v1230, 127
        %v1240 = vpop.permute.xlu0 %1239
        %1241 = vrot.lane.b32.xlu0 %v1231, 127
        %v1242 = vpop.permute.xlu0 %1241
        %1243 = vrot.lane.b32.xlu0 %v1232, 127
        %v1244 = vpop.permute.xlu0 %1243
        %v1249 = vadd.f32 %v1206, %v1238
        %v1250 = vadd.f32 %v1207, %v1240
        %v1251 = vadd.f32 %v1208, %v1242
        %v1252 = vadd.f32 %v1209, %v1244
        %v1253 = vstv %s256
        %v1254 = vmul.f32 %v1253, %v1196
        %v1255 = vmul.f32 %v1253, %v1197
        %v1256 = vmul.f32 %v1253, %v1198
        %v1257 = vmul.f32 %v1253, %v1199
        %1262 = vrot.lane.b32.xlu0 %v1254, 127
        %v1263 = vpop.permute.xlu0 %1262
        %1264 = vrot.lane.b32.xlu0 %v1255, 127
        %v1265 = vpop.permute.xlu0 %1264
        %1266 = vrot.lane.b32.xlu0 %v1256, 127
        %v1267 = vpop.permute.xlu0 %1266
        %1268 = vrot.lane.b32.xlu0 %v1257, 127
        %v1269 = vpop.permute.xlu0 %1268
        %v1274 = vadd.f32 %v1215, %v1263
        %v1275 = vadd.f32 %v1216, %v1265
        %v1276 = vadd.f32 %v1217, %v1267
        %v1277 = vadd.f32 %v1218, %v1269
        %v1278 = vstv %s283
        %v1279 = vmul.f32 %v1278, %v1196
        %v1280 = vmul.f32 %v1278, %v1197
        %v1281 = vmul.f32 %v1278, %v1198
        %v1282 = vmul.f32 %v1278, %v1199
        %1287 = vrot.lane.b32.xlu0 %v1279, 127
        %v1288 = vpop.permute.xlu0 %1287
        %1289 = vrot.lane.b32.xlu0 %v1280, 127
        %v1290 = vpop.permute.xlu0 %1289
        %1291 = vrot.lane.b32.xlu0 %v1281, 127
        %v1292 = vpop.permute.xlu0 %1291
        %1293 = vrot.lane.b32.xlu0 %v1282, 127
        %v1294 = vpop.permute.xlu0 %1293
        %v1299 = vadd.f32 %v1224, %v1288
        %v1300 = vadd.f32 %v1225, %v1290
        %v1301 = vadd.f32 %v1226, %v1292
        %v1302 = vadd.f32 %v1227, %v1294
        %v1303 = vstv %s230
        %v1304 = vmul.f32 %v1303, %v1196
        %v1305 = vmul.f32 %v1303, %v1197
        %v1306 = vmul.f32 %v1303, %v1198
        %v1307 = vmul.f32 %v1303, %v1199
        %1312 = vrot.lane.b32.xlu0 %v1304, 126
        %v1313 = vpop.permute.xlu0 %1312
        %1314 = vrot.lane.b32.xlu0 %v1305, 126
        %v1315 = vpop.permute.xlu0 %1314
        %1316 = vrot.lane.b32.xlu0 %v1306, 126
        %v1317 = vpop.permute.xlu0 %1316
        %1318 = vrot.lane.b32.xlu0 %v1307, 126
        %v1319 = vpop.permute.xlu0 %1318
        %v1324 = vadd.f32 %v1249, %v1313
        %v1325 = vadd.f32 %v1250, %v1315
        %v1326 = vadd.f32 %v1251, %v1317
        %v1327 = vadd.f32 %v1252, %v1319
        %v1328 = vstv %s257
        %v1329 = vmul.f32 %v1328, %v1196
        %v1330 = vmul.f32 %v1328, %v1197
        %v1331 = vmul.f32 %v1328, %v1198
        %v1332 = vmul.f32 %v1328, %v1199
        %1337 = vrot.lane.b32.xlu0 %v1329, 126
        %v1338 = vpop.permute.xlu0 %1337
        %1339 = vrot.lane.b32.xlu0 %v1330, 126
        %v1340 = vpop.permute.xlu0 %1339
        %1341 = vrot.lane.b32.xlu0 %v1331, 126
        %v1342 = vpop.permute.xlu0 %1341
        %1343 = vrot.lane.b32.xlu0 %v1332, 126
        %v1344 = vpop.permute.xlu0 %1343
        %v1349 = vadd.f32 %v1274, %v1338
        %v1350 = vadd.f32 %v1275, %v1340
        %v1351 = vadd.f32 %v1276, %v1342
        %v1352 = vadd.f32 %v1277, %v1344
        %v1353 = vstv %s284
        %v1354 = vmul.f32 %v1353, %v1196
        %v1355 = vmul.f32 %v1353, %v1197
        %v1356 = vmul.f32 %v1353, %v1198
        %v1357 = vmul.f32 %v1353, %v1199
        %1362 = vrot.lane.b32.xlu0 %v1354, 126
        %v1363 = vpop.permute.xlu0 %1362
        %1364 = vrot.lane.b32.xlu0 %v1355, 126
        %v1365 = vpop.permute.xlu0 %1364
        %1366 = vrot.lane.b32.xlu0 %v1356, 126
        %v1367 = vpop.permute.xlu0 %1366
        %1368 = vrot.lane.b32.xlu0 %v1357, 126
        %v1369 = vpop.permute.xlu0 %1368
        %v1374 = vadd.f32 %v1299, %v1363
        %v1375 = vadd.f32 %v1300, %v1365
        %v1376 = vadd.f32 %v1301, %v1367
        %v1377 = vadd.f32 %v1302, %v1369
        %v1378 = vstv %s231
        %v1379 = vmul.f32 %v1378, %v1196
        %v1380 = vmul.f32 %v1378, %v1197
        %v1381 = vmul.f32 %v1378, %v1198
        %v1382 = vmul.f32 %v1378, %v1199
        %v1383 = vmul.f32 %v1378, %v1200
        %v1389 = vrot.slane %v1379, 1
        %v1390 = vrot.slane %v1380, 1
        %v1391 = vsel %vm604, %v1389, %v1390
        %v1392 = vrot.slane %v1381, 1
        %v1393 = vsel %vm604, %v1390, %v1392
        %v1394 = vrot.slane %v1382, 1
        %v1395 = vsel %vm604, %v1392, %v1394
        %v1396 = vrot.slane %v1383, 1
        %v1397 = vsel %vm604, %v1394, %v1396
        %v1402 = vadd.f32 %v1324, %v1391
        %v1403 = vadd.f32 %v1325, %v1393
        %v1404 = vadd.f32 %v1326, %v1395
        %v1405 = vadd.f32 %v1327, %v1397
        %v1406 = vstv %s258
        %v1407 = vmul.f32 %v1406, %v1196
        %v1408 = vmul.f32 %v1406, %v1197
        %v1409 = vmul.f32 %v1406, %v1198
        %v1410 = vmul.f32 %v1406, %v1199
        %v1411 = vmul.f32 %v1406, %v1200
        %v1417 = vrot.slane %v1407, 1
        %v1418 = vrot.slane %v1408, 1
        %v1419 = vsel %vm604, %v1417, %v1418
        %v1420 = vrot.slane %v1409, 1
        %v1421 = vsel %vm604, %v1418, %v1420
        %v1422 = vrot.slane %v1410, 1
        %v1423 = vsel %vm604, %v1420, %v1422
        %v1424 = vrot.slane %v1411, 1
        %v1425 = vsel %vm604, %v1422, %v1424
        %v1430 = vadd.f32 %v1349, %v1419
        %v1431 = vadd.f32 %v1350, %v1421
        %v1432 = vadd.f32 %v1351, %v1423
        %v1433 = vadd.f32 %v1352, %v1425
        %v1434 = vstv %s285
        %v1435 = vmul.f32 %v1434, %v1196
        %v1436 = vmul.f32 %v1434, %v1197
        %v1437 = vmul.f32 %v1434, %v1198
        %v1438 = vmul.f32 %v1434, %v1199
        %v1439 = vmul.f32 %v1434, %v1200
        %v1445 = vrot.slane %v1435, 1
        %v1446 = vrot.slane %v1436, 1
        %v1447 = vsel %vm604, %v1445, %v1446
        %v1448 = vrot.slane %v1437, 1
        %v1449 = vsel %vm604, %v1446, %v1448
        %v1450 = vrot.slane %v1438, 1
        %v1451 = vsel %vm604, %v1448, %v1450
        %v1452 = vrot.slane %v1439, 1
        %v1453 = vsel %vm604, %v1450, %v1452
        %v1458 = vadd.f32 %v1374, %v1447
        %v1459 = vadd.f32 %v1375, %v1449
        %v1460 = vadd.f32 %v1376, %v1451
        %v1461 = vadd.f32 %v1377, %v1453
        %v1462 = vstv %s232
        %v1463 = vmul.f32 %v1462, %v1196
        %v1464 = vmul.f32 %v1462, %v1197
        %v1465 = vmul.f32 %v1462, %v1198
        %v1466 = vmul.f32 %v1462, %v1199
        %v1467 = vmul.f32 %v1462, %v1200
        %v1473 = vrot.slane %v1463, 1
        %v1474 = vrot.slane %v1464, 1
        %v1475 = vsel %vm604, %v1473, %v1474
        %v1476 = vrot.slane %v1465, 1
        %v1477 = vsel %vm604, %v1474, %v1476
        %v1478 = vrot.slane %v1466, 1
        %v1479 = vsel %vm604, %v1476, %v1478
        %v1480 = vrot.slane %v1467, 1
        %v1481 = vsel %vm604, %v1478, %v1480
        %1482 = vrot.lane.b32.xlu0 %v1475, 127
        %v1483 = vpop.permute.xlu0 %1482
        %1484 = vrot.lane.b32.xlu0 %v1477, 127
        %v1485 = vpop.permute.xlu0 %1484
        %1486 = vrot.lane.b32.xlu0 %v1479, 127
        %v1487 = vpop.permute.xlu0 %1486
        %1488 = vrot.lane.b32.xlu0 %v1481, 127
        %v1489 = vpop.permute.xlu0 %1488
        %v1494 = vadd.f32 %v1402, %v1483
        %v1495 = vadd.f32 %v1403, %v1485
        %v1496 = vadd.f32 %v1404, %v1487
        %v1497 = vadd.f32 %v1405, %v1489
        %v1498 = vstv %s259
        %v1499 = vmul.f32 %v1498, %v1196
        %v1500 = vmul.f32 %v1498, %v1197
        %v1501 = vmul.f32 %v1498, %v1198
        %v1502 = vmul.f32 %v1498, %v1199
        %v1503 = vmul.f32 %v1498, %v1200
        %v1509 = vrot.slane %v1499, 1
        %v1510 = vrot.slane %v1500, 1
        %v1511 = vsel %vm604, %v1509, %v1510
        %v1512 = vrot.slane %v1501, 1
        %v1513 = vsel %vm604, %v1510, %v1512
        %v1514 = vrot.slane %v1502, 1
        %v1515 = vsel %vm604, %v1512, %v1514
        %v1516 = vrot.slane %v1503, 1
        %v1517 = vsel %vm604, %v1514, %v1516
        %1518 = vrot.lane.b32.xlu0 %v1511, 127
        %v1519 = vpop.permute.xlu0 %1518
        %1520 = vrot.lane.b32.xlu0 %v1513, 127
        %v1521 = vpop.permute.xlu0 %1520
        %1522 = vrot.lane.b32.xlu0 %v1515, 127
        %v1523 = vpop.permute.xlu0 %1522
        %1524 = vrot.lane.b32.xlu0 %v1517, 127
        %v1525 = vpop.permute.xlu0 %1524
        %v1530 = vadd.f32 %v1430, %v1519
        %v1531 = vadd.f32 %v1431, %v1521
        %v1532 = vadd.f32 %v1432, %v1523
        %v1533 = vadd.f32 %v1433, %v1525
        %v1534 = vstv %s286
        %v1535 = vmul.f32 %v1534, %v1196
        %v1536 = vmul.f32 %v1534, %v1197
        %v1537 = vmul.f32 %v1534, %v1198
        %v1538 = vmul.f32 %v1534, %v1199
        %v1539 = vmul.f32 %v1534, %v1200
        %v1545 = vrot.slane %v1535, 1
        %v1546 = vrot.slane %v1536, 1
        %v1547 = vsel %vm604, %v1545, %v1546
        %v1548 = vrot.slane %v1537, 1
        %v1549 = vsel %vm604, %v1546, %v1548
        %v1550 = vrot.slane %v1538, 1
        %v1551 = vsel %vm604, %v1548, %v1550
        %v1552 = vrot.slane %v1539, 1
        %v1553 = vsel %vm604, %v1550, %v1552
        %1554 = vrot.lane.b32.xlu0 %v1547, 127
        %v1555 = vpop.permute.xlu0 %1554
        %1556 = vrot.lane.b32.xlu0 %v1549, 127
        %v1557 = vpop.permute.xlu0 %1556
        %1558 = vrot.lane.b32.xlu0 %v1551, 127
        %v1559 = vpop.permute.xlu0 %1558
        %1560 = vrot.lane.b32.xlu0 %v1553, 127
        %v1561 = vpop.permute.xlu0 %1560
        %v1566 = vadd.f32 %v1458, %v1555
        %v1567 = vadd.f32 %v1459, %v1557
        %v1568 = vadd.f32 %v1460, %v1559
        %v1569 = vadd.f32 %v1461, %v1561
        %v1570 = vstv %s233
        %v1571 = vmul.f32 %v1570, %v1196
        %v1572 = vmul.f32 %v1570, %v1197
        %v1573 = vmul.f32 %v1570, %v1198
        %v1574 = vmul.f32 %v1570, %v1199
        %v1575 = vmul.f32 %v1570, %v1200
        %v1581 = vrot.slane %v1571, 1
        %v1582 = vrot.slane %v1572, 1
        %v1583 = vsel %vm604, %v1581, %v1582
        %v1584 = vrot.slane %v1573, 1
        %v1585 = vsel %vm604, %v1582, %v1584
        %v1586 = vrot.slane %v1574, 1
        %v1587 = vsel %vm604, %v1584, %v1586
        %v1588 = vrot.slane %v1575, 1
        %v1589 = vsel %vm604, %v1586, %v1588
        %1590 = vrot.lane.b32.xlu0 %v1583, 126
        %v1591 = vpop.permute.xlu0 %1590
        %1592 = vrot.lane.b32.xlu0 %v1585, 126
        %v1593 = vpop.permute.xlu0 %1592
        %1594 = vrot.lane.b32.xlu0 %v1587, 126
        %v1595 = vpop.permute.xlu0 %1594
        %1596 = vrot.lane.b32.xlu0 %v1589, 126
        %v1597 = vpop.permute.xlu0 %1596
        %v1602 = vadd.f32 %v1494, %v1591
        %v1603 = vadd.f32 %v1495, %v1593
        %v1604 = vadd.f32 %v1496, %v1595
        %v1605 = vadd.f32 %v1497, %v1597
        %v1606 = vstv %s260
        %v1607 = vmul.f32 %v1606, %v1196
        %v1608 = vmul.f32 %v1606, %v1197
        %v1609 = vmul.f32 %v1606, %v1198
        %v1610 = vmul.f32 %v1606, %v1199
        %v1611 = vmul.f32 %v1606, %v1200
        %v1617 = vrot.slane %v1607, 1
        %v1618 = vrot.slane %v1608, 1
        %v1619 = vsel %vm604, %v1617, %v1618
        %v1620 = vrot.slane %v1609, 1
        %v1621 = vsel %vm604, %v1618, %v1620
        %v1622 = vrot.slane %v1610, 1
        %v1623 = vsel %vm604, %v1620, %v1622
        %v1624 = vrot.slane %v1611, 1
        %v1625 = vsel %vm604, %v1622, %v1624
        %1626 = vrot.lane.b32.xlu0 %v1619, 126
        %v1627 = vpop.permute.xlu0 %1626
        %1628 = vrot.lane.b32.xlu0 %v1621, 126
        %v1629 = vpop.permute.xlu0 %1628
        %1630 = vrot.lane.b32.xlu0 %v1623, 126
        %v1631 = vpop.permute.xlu0 %1630
        %1632 = vrot.lane.b32.xlu0 %v1625, 126
        %v1633 = vpop.permute.xlu0 %1632
        %v1638 = vadd.f32 %v1530, %v1627
        %v1639 = vadd.f32 %v1531, %v1629
        %v1640 = vadd.f32 %v1532, %v1631
        %v1641 = vadd.f32 %v1533, %v1633
        %v1642 = vstv %s287
        %v1643 = vmul.f32 %v1642, %v1196
        %v1644 = vmul.f32 %v1642, %v1197
        %v1645 = vmul.f32 %v1642, %v1198
        %v1646 = vmul.f32 %v1642, %v1199
        %v1647 = vmul.f32 %v1642, %v1200
        %v1653 = vrot.slane %v1643, 1
        %v1654 = vrot.slane %v1644, 1
        %v1655 = vsel %vm604, %v1653, %v1654
        %v1656 = vrot.slane %v1645, 1
        %v1657 = vsel %vm604, %v1654, %v1656
        %v1658 = vrot.slane %v1646, 1
        %v1659 = vsel %vm604, %v1656, %v1658
        %v1660 = vrot.slane %v1647, 1
        %v1661 = vsel %vm604, %v1658, %v1660
        %1662 = vrot.lane.b32.xlu0 %v1655, 126
        %v1663 = vpop.permute.xlu0 %1662
        %1664 = vrot.lane.b32.xlu0 %v1657, 126
        %v1665 = vpop.permute.xlu0 %1664
        %1666 = vrot.lane.b32.xlu0 %v1659, 126
        %v1667 = vpop.permute.xlu0 %1666
        %1668 = vrot.lane.b32.xlu0 %v1661, 126
        %v1669 = vpop.permute.xlu0 %1668
        %v1674 = vadd.f32 %v1566, %v1663
        %v1675 = vadd.f32 %v1567, %v1665
        %v1676 = vadd.f32 %v1568, %v1667
        %v1677 = vadd.f32 %v1569, %v1669
        %v1678 = vstv %s234
        %v1679 = vmul.f32 %v1678, %v1196
        %v1680 = vmul.f32 %v1678, %v1197
        %v1681 = vmul.f32 %v1678, %v1198
        %v1682 = vmul.f32 %v1678, %v1199
        %v1683 = vmul.f32 %v1678, %v1200
        %v1689 = vrot.slane %v1679, 2
        %v1690 = vrot.slane %v1680, 2
        %v1691 = vsel %vm905, %v1689, %v1690
        %v1692 = vrot.slane %v1681, 2
        %v1693 = vsel %vm905, %v1690, %v1692
        %v1694 = vrot.slane %v1682, 2
        %v1695 = vsel %vm905, %v1692, %v1694
        %v1696 = vrot.slane %v1683, 2
        %v1697 = vsel %vm905, %v1694, %v1696
        %v1702 = vadd.f32 %v1602, %v1691
        %v1703 = vadd.f32 %v1603, %v1693
        %v1704 = vadd.f32 %v1604, %v1695
        %v1705 = vadd.f32 %v1605, %v1697
        %v1706 = vstv %s261
        %v1707 = vmul.f32 %v1706, %v1196
        %v1708 = vmul.f32 %v1706, %v1197
        %v1709 = vmul.f32 %v1706, %v1198
        %v1710 = vmul.f32 %v1706, %v1199
        %v1711 = vmul.f32 %v1706, %v1200
        %v1717 = vrot.slane %v1707, 2
        %v1718 = vrot.slane %v1708, 2
        %v1719 = vsel %vm905, %v1717, %v1718
        %v1720 = vrot.slane %v1709, 2
        %v1721 = vsel %vm905, %v1718, %v1720
        %v1722 = vrot.slane %v1710, 2
        %v1723 = vsel %vm905, %v1720, %v1722
        %v1724 = vrot.slane %v1711, 2
        %v1725 = vsel %vm905, %v1722, %v1724
        %v1730 = vadd.f32 %v1638, %v1719
        %v1731 = vadd.f32 %v1639, %v1721
        %v1732 = vadd.f32 %v1640, %v1723
        %v1733 = vadd.f32 %v1641, %v1725
        %v1734 = vstv %s288
        %v1735 = vmul.f32 %v1734, %v1196
        %v1736 = vmul.f32 %v1734, %v1197
        %v1737 = vmul.f32 %v1734, %v1198
        %v1738 = vmul.f32 %v1734, %v1199
        %v1739 = vmul.f32 %v1734, %v1200
        %v1745 = vrot.slane %v1735, 2
        %v1746 = vrot.slane %v1736, 2
        %v1747 = vsel %vm905, %v1745, %v1746
        %v1748 = vrot.slane %v1737, 2
        %v1749 = vsel %vm905, %v1746, %v1748
        %v1750 = vrot.slane %v1738, 2
        %v1751 = vsel %vm905, %v1748, %v1750
        %v1752 = vrot.slane %v1739, 2
        %v1753 = vsel %vm905, %v1750, %v1752
        %v1758 = vadd.f32 %v1674, %v1747
        %v1759 = vadd.f32 %v1675, %v1749
        %v1760 = vadd.f32 %v1676, %v1751
        %v1761 = vadd.f32 %v1677, %v1753
        %v1762 = vstv %s235
        %v1763 = vmul.f32 %v1762, %v1196
        %v1764 = vmul.f32 %v1762, %v1197
        %v1765 = vmul.f32 %v1762, %v1198
        %v1766 = vmul.f32 %v1762, %v1199
        %v1767 = vmul.f32 %v1762, %v1200
        %v1773 = vrot.slane %v1763, 2
        %v1774 = vrot.slane %v1764, 2
        %v1775 = vsel %vm905, %v1773, %v1774
        %v1776 = vrot.slane %v1765, 2
        %v1777 = vsel %vm905, %v1774, %v1776
        %v1778 = vrot.slane %v1766, 2
        %v1779 = vsel %vm905, %v1776, %v1778
        %v1780 = vrot.slane %v1767, 2
        %v1781 = vsel %vm905, %v1778, %v1780
        %1782 = vrot.lane.b32.xlu0 %v1775, 127
        %v1783 = vpop.permute.xlu0 %1782
        %1784 = vrot.lane.b32.xlu0 %v1777, 127
        %v1785 = vpop.permute.xlu0 %1784
        %1786 = vrot.lane.b32.xlu0 %v1779, 127
        %v1787 = vpop.permute.xlu0 %1786
        %1788 = vrot.lane.b32.xlu0 %v1781, 127
        %v1789 = vpop.permute.xlu0 %1788
        %v1794 = vadd.f32 %v1702, %v1783
        %v1795 = vadd.f32 %v1703, %v1785
        %v1796 = vadd.f32 %v1704, %v1787
        %v1797 = vadd.f32 %v1705, %v1789
        %v1798 = vstv %s262
        %v1799 = vmul.f32 %v1798, %v1196
        %v1800 = vmul.f32 %v1798, %v1197
        %v1801 = vmul.f32 %v1798, %v1198
        %v1802 = vmul.f32 %v1798, %v1199
        %v1803 = vmul.f32 %v1798, %v1200
        %v1809 = vrot.slane %v1799, 2
        %v1810 = vrot.slane %v1800, 2
        %v1811 = vsel %vm905, %v1809, %v1810
        %v1812 = vrot.slane %v1801, 2
        %v1813 = vsel %vm905, %v1810, %v1812
        %v1814 = vrot.slane %v1802, 2
        %v1815 = vsel %vm905, %v1812, %v1814
        %v1816 = vrot.slane %v1803, 2
        %v1817 = vsel %vm905, %v1814, %v1816
        %1818 = vrot.lane.b32.xlu0 %v1811, 127
        %v1819 = vpop.permute.xlu0 %1818
        %1820 = vrot.lane.b32.xlu0 %v1813, 127
        %v1821 = vpop.permute.xlu0 %1820
        %1822 = vrot.lane.b32.xlu0 %v1815, 127
        %v1823 = vpop.permute.xlu0 %1822
        %1824 = vrot.lane.b32.xlu0 %v1817, 127
        %v1825 = vpop.permute.xlu0 %1824
        %v1830 = vadd.f32 %v1730, %v1819
        %v1831 = vadd.f32 %v1731, %v1821
        %v1832 = vadd.f32 %v1732, %v1823
        %v1833 = vadd.f32 %v1733, %v1825
        %v1834 = vstv %s289
        %v1835 = vmul.f32 %v1834, %v1196
        %v1836 = vmul.f32 %v1834, %v1197
        %v1837 = vmul.f32 %v1834, %v1198
        %v1838 = vmul.f32 %v1834, %v1199
        %v1839 = vmul.f32 %v1834, %v1200
        %v1845 = vrot.slane %v1835, 2
        %v1846 = vrot.slane %v1836, 2
        %v1847 = vsel %vm905, %v1845, %v1846
        %v1848 = vrot.slane %v1837, 2
        %v1849 = vsel %vm905, %v1846, %v1848
        %v1850 = vrot.slane %v1838, 2
        %v1851 = vsel %vm905, %v1848, %v1850
        %v1852 = vrot.slane %v1839, 2
        %v1853 = vsel %vm905, %v1850, %v1852
        %1854 = vrot.lane.b32.xlu0 %v1847, 127
        %v1855 = vpop.permute.xlu0 %1854
        %1856 = vrot.lane.b32.xlu0 %v1849, 127
        %v1857 = vpop.permute.xlu0 %1856
        %1858 = vrot.lane.b32.xlu0 %v1851, 127
        %v1859 = vpop.permute.xlu0 %1858
        %1860 = vrot.lane.b32.xlu0 %v1853, 127
        %v1861 = vpop.permute.xlu0 %1860
        %v1866 = vadd.f32 %v1758, %v1855
        %v1867 = vadd.f32 %v1759, %v1857
        %v1868 = vadd.f32 %v1760, %v1859
        %v1869 = vadd.f32 %v1761, %v1861
        %v1870 = vstv %s236
        %v1871 = vmul.f32 %v1870, %v1196
        %v1872 = vmul.f32 %v1870, %v1197
        %v1873 = vmul.f32 %v1870, %v1198
        %v1874 = vmul.f32 %v1870, %v1199
        %v1875 = vmul.f32 %v1870, %v1200
        %v1881 = vrot.slane %v1871, 2
        %v1882 = vrot.slane %v1872, 2
        %v1883 = vsel %vm905, %v1881, %v1882
        %v1884 = vrot.slane %v1873, 2
        %v1885 = vsel %vm905, %v1882, %v1884
        %v1886 = vrot.slane %v1874, 2
        %v1887 = vsel %vm905, %v1884, %v1886
        %v1888 = vrot.slane %v1875, 2
        %v1889 = vsel %vm905, %v1886, %v1888
        %1890 = vrot.lane.b32.xlu0 %v1883, 126
        %v1891 = vpop.permute.xlu0 %1890
        %1892 = vrot.lane.b32.xlu0 %v1885, 126
        %v1893 = vpop.permute.xlu0 %1892
        %1894 = vrot.lane.b32.xlu0 %v1887, 126
        %v1895 = vpop.permute.xlu0 %1894
        %1896 = vrot.lane.b32.xlu0 %v1889, 126
        %v1897 = vpop.permute.xlu0 %1896
        %v1902 = vadd.f32 %v1794, %v1891
        %v1903 = vadd.f32 %v1795, %v1893
        %v1904 = vadd.f32 %v1796, %v1895
        %v1905 = vadd.f32 %v1797, %v1897
        %v1906 = vstv %s263
        %v1907 = vmul.f32 %v1906, %v1196
        %v1908 = vmul.f32 %v1906, %v1197
        %v1909 = vmul.f32 %v1906, %v1198
        %v1910 = vmul.f32 %v1906, %v1199
        %v1911 = vmul.f32 %v1906, %v1200
        %v1917 = vrot.slane %v1907, 2
        %v1918 = vrot.slane %v1908, 2
        %v1919 = vsel %vm905, %v1917, %v1918
        %v1920 = vrot.slane %v1909, 2
        %v1921 = vsel %vm905, %v1918, %v1920
        %v1922 = vrot.slane %v1910, 2
        %v1923 = vsel %vm905, %v1920, %v1922
        %v1924 = vrot.slane %v1911, 2
        %v1925 = vsel %vm905, %v1922, %v1924
        %1926 = vrot.lane.b32.xlu0 %v1919, 126
        %v1927 = vpop.permute.xlu0 %1926
        %1928 = vrot.lane.b32.xlu0 %v1921, 126
        %v1929 = vpop.permute.xlu0 %1928
        %1930 = vrot.lane.b32.xlu0 %v1923, 126
        %v1931 = vpop.permute.xlu0 %1930
        %1932 = vrot.lane.b32.xlu0 %v1925, 126
        %v1933 = vpop.permute.xlu0 %1932
        %v1938 = vadd.f32 %v1830, %v1927
        %v1939 = vadd.f32 %v1831, %v1929
        %v1940 = vadd.f32 %v1832, %v1931
        %v1941 = vadd.f32 %v1833, %v1933
        %v1942 = vstv %s290
        %v1943 = vmul.f32 %v1942, %v1196
        %v1944 = vmul.f32 %v1942, %v1197
        %v1945 = vmul.f32 %v1942, %v1198
        %v1946 = vmul.f32 %v1942, %v1199
        %v1947 = vmul.f32 %v1942, %v1200
        %v1953 = vrot.slane %v1943, 2
        %v1954 = vrot.slane %v1944, 2
        %v1955 = vsel %vm905, %v1953, %v1954
        %v1956 = vrot.slane %v1945, 2
        %v1957 = vsel %vm905, %v1954, %v1956
        %v1958 = vrot.slane %v1946, 2
        %v1959 = vsel %vm905, %v1956, %v1958
        %v1960 = vrot.slane %v1947, 2
        %v1961 = vsel %vm905, %v1958, %v1960
        %1962 = vrot.lane.b32.xlu0 %v1955, 126
        %v1963 = vpop.permute.xlu0 %1962
        %1964 = vrot.lane.b32.xlu0 %v1957, 126
        %v1965 = vpop.permute.xlu0 %1964
        %1966 = vrot.lane.b32.xlu0 %v1959, 126
        %v1967 = vpop.permute.xlu0 %1966
        %1968 = vrot.lane.b32.xlu0 %v1961, 126
        %v1969 = vpop.permute.xlu0 %1968
        %v1974 = vadd.f32 %v1866, %v1963
        %v1975 = vadd.f32 %v1867, %v1965
        %v1976 = vadd.f32 %v1868, %v1967
        %v1977 = vadd.f32 %v1869, %v1969
        %s1978 = scalar_lea.vmem [#allocation2], 80
        %v1979 = vld [vmem:[%s1978] sm:$0xff]
        %v1980 = vld [vmem:[%s1978 + $0x8] sm:$0xff]
        %v1981 = vld [vmem:[%s1978 + $0x10] sm:$0xff]
        %v1982 = vld [vmem:[%s1978 + $0x18] sm:$0xff]
        %v1983 = vld [vmem:[%s1978 + $0x20] sm:$0x3]
        %v1984 = vstv %s237
        %v1985 = vmul.f32 %v1984, %v1979
        %v1986 = vmul.f32 %v1984, %v1980
        %v1987 = vmul.f32 %v1984, %v1981
        %v1988 = vmul.f32 %v1984, %v1982
        %v1989 = vadd.f32 %v1902, %v1985
        %v1990 = vadd.f32 %v1903, %v1986
        %v1991 = vadd.f32 %v1904, %v1987
        %v1992 = vadd.f32 %v1905, %v1988
        %v1993 = vstv %s264
        %v1994 = vmul.f32 %v1993, %v1979
        %v1995 = vmul.f32 %v1993, %v1980
        %v1996 = vmul.f32 %v1993, %v1981
        %v1997 = vmul.f32 %v1993, %v1982
        %v1998 = vadd.f32 %v1938, %v1994
        %v1999 = vadd.f32 %v1939, %v1995
        %v2000 = vadd.f32 %v1940, %v1996
        %v2001 = vadd.f32 %v1941, %v1997
        %v2002 = vstv %s291
        %v2003 = vmul.f32 %v2002, %v1979
        %v2004 = vmul.f32 %v2002, %v1980
        %v2005 = vmul.f32 %v2002, %v1981
        %v2006 = vmul.f32 %v2002, %v1982
        %v2007 = vadd.f32 %v1974, %v2003
        %v2008 = vadd.f32 %v1975, %v2004
        %v2009 = vadd.f32 %v1976, %v2005
        %v2010 = vadd.f32 %v1977, %v2006
        %v2011 = vstv %s238
        %v2012 = vmul.f32 %v2011, %v1979
        %v2013 = vmul.f32 %v2011, %v1980
        %v2014 = vmul.f32 %v2011, %v1981
        %v2015 = vmul.f32 %v2011, %v1982
        %2020 = vrot.lane.b32.xlu0 %v2012, 127
        %v2021 = vpop.permute.xlu0 %2020
        %2022 = vrot.lane.b32.xlu0 %v2013, 127
        %v2023 = vpop.permute.xlu0 %2022
        %2024 = vrot.lane.b32.xlu0 %v2014, 127
        %v2025 = vpop.permute.xlu0 %2024
        %2026 = vrot.lane.b32.xlu0 %v2015, 127
        %v2027 = vpop.permute.xlu0 %2026
        %v2032 = vadd.f32 %v1989, %v2021
        %v2033 = vadd.f32 %v1990, %v2023
        %v2034 = vadd.f32 %v1991, %v2025
        %v2035 = vadd.f32 %v1992, %v2027
        %v2036 = vstv %s265
        %v2037 = vmul.f32 %v2036, %v1979
        %v2038 = vmul.f32 %v2036, %v1980
        %v2039 = vmul.f32 %v2036, %v1981
        %v2040 = vmul.f32 %v2036, %v1982
        %2045 = vrot.lane.b32.xlu0 %v2037, 127
        %v2046 = vpop.permute.xlu0 %2045
        %2047 = vrot.lane.b32.xlu0 %v2038, 127
        %v2048 = vpop.permute.xlu0 %2047
        %2049 = vrot.lane.b32.xlu0 %v2039, 127
        %v2050 = vpop.permute.xlu0 %2049
        %2051 = vrot.lane.b32.xlu0 %v2040, 127
        %v2052 = vpop.permute.xlu0 %2051
        %v2057 = vadd.f32 %v1998, %v2046
        %v2058 = vadd.f32 %v1999, %v2048
        %v2059 = vadd.f32 %v2000, %v2050
        %v2060 = vadd.f32 %v2001, %v2052
        %v2061 = vstv %s292
        %v2062 = vmul.f32 %v2061, %v1979
        %v2063 = vmul.f32 %v2061, %v1980
        %v2064 = vmul.f32 %v2061, %v1981
        %v2065 = vmul.f32 %v2061, %v1982
        %2070 = vrot.lane.b32.xlu0 %v2062, 127
        %v2071 = vpop.permute.xlu0 %2070
        %2072 = vrot.lane.b32.xlu0 %v2063, 127
        %v2073 = vpop.permute.xlu0 %2072
        %2074 = vrot.lane.b32.xlu0 %v2064, 127
        %v2075 = vpop.permute.xlu0 %2074
        %2076 = vrot.lane.b32.xlu0 %v2065, 127
        %v2077 = vpop.permute.xlu0 %2076
        %v2082 = vadd.f32 %v2007, %v2071
        %v2083 = vadd.f32 %v2008, %v2073
        %v2084 = vadd.f32 %v2009, %v2075
        %v2085 = vadd.f32 %v2010, %v2077
        %v2086 = vstv %s239
        %v2087 = vmul.f32 %v2086, %v1979
        %v2088 = vmul.f32 %v2086, %v1980
        %v2089 = vmul.f32 %v2086, %v1981
        %v2090 = vmul.f32 %v2086, %v1982
        %2095 = vrot.lane.b32.xlu0 %v2087, 126
        %v2096 = vpop.permute.xlu0 %2095
        %2097 = vrot.lane.b32.xlu0 %v2088, 126
        %v2098 = vpop.permute.xlu0 %2097
        %2099 = vrot.lane.b32.xlu0 %v2089, 126
        %v2100 = vpop.permute.xlu0 %2099
        %2101 = vrot.lane.b32.xlu0 %v2090, 126
        %v2102 = vpop.permute.xlu0 %2101
        %v2107 = vadd.f32 %v2032, %v2096
        %v2108 = vadd.f32 %v2033, %v2098
        %v2109 = vadd.f32 %v2034, %v2100
        %v2110 = vadd.f32 %v2035, %v2102
        %v2111 = vstv %s266
        %v2112 = vmul.f32 %v2111, %v1979
        %v2113 = vmul.f32 %v2111, %v1980
        %v2114 = vmul.f32 %v2111, %v1981
        %v2115 = vmul.f32 %v2111, %v1982
        %2120 = vrot.lane.b32.xlu0 %v2112, 126
        %v2121 = vpop.permute.xlu0 %2120
        %2122 = vrot.lane.b32.xlu0 %v2113, 126
        %v2123 = vpop.permute.xlu0 %2122
        %2124 = vrot.lane.b32.xlu0 %v2114, 126
        %v2125 = vpop.permute.xlu0 %2124
        %2126 = vrot.lane.b32.xlu0 %v2115, 126
        %v2127 = vpop.permute.xlu0 %2126
        %v2132 = vadd.f32 %v2057, %v2121
        %v2133 = vadd.f32 %v2058, %v2123
        %v2134 = vadd.f32 %v2059, %v2125
        %v2135 = vadd.f32 %v2060, %v2127
        %v2136 = vstv %s293
        %v2137 = vmul.f32 %v2136, %v1979
        %v2138 = vmul.f32 %v2136, %v1980
        %v2139 = vmul.f32 %v2136, %v1981
        %v2140 = vmul.f32 %v2136, %v1982
        %2145 = vrot.lane.b32.xlu0 %v2137, 126
        %v2146 = vpop.permute.xlu0 %2145
        %2147 = vrot.lane.b32.xlu0 %v2138, 126
        %v2148 = vpop.permute.xlu0 %2147
        %2149 = vrot.lane.b32.xlu0 %v2139, 126
        %v2150 = vpop.permute.xlu0 %2149
        %2151 = vrot.lane.b32.xlu0 %v2140, 126
        %v2152 = vpop.permute.xlu0 %2151
        %v2157 = vadd.f32 %v2082, %v2146
        %v2158 = vadd.f32 %v2083, %v2148
        %v2159 = vadd.f32 %v2084, %v2150
        %v2160 = vadd.f32 %v2085, %v2152
        %v2161 = vstv %s240
        %v2162 = vmul.f32 %v2161, %v1979
        %v2163 = vmul.f32 %v2161, %v1980
        %v2164 = vmul.f32 %v2161, %v1981
        %v2165 = vmul.f32 %v2161, %v1982
        %v2166 = vmul.f32 %v2161, %v1983
        %v2172 = vrot.slane %v2162, 1
        %v2173 = vrot.slane %v2163, 1
        %v2174 = vsel %vm604, %v2172, %v2173
        %v2175 = vrot.slane %v2164, 1
        %v2176 = vsel %vm604, %v2173, %v2175
        %v2177 = vrot.slane %v2165, 1
        %v2178 = vsel %vm604, %v2175, %v2177
        %v2179 = vrot.slane %v2166, 1
        %v2180 = vsel %vm604, %v2177, %v2179
        %v2185 = vadd.f32 %v2107, %v2174
        %v2186 = vadd.f32 %v2108, %v2176
        %v2187 = vadd.f32 %v2109, %v2178
        %v2188 = vadd.f32 %v2110, %v2180
        %v2189 = vstv %s267
        %v2190 = vmul.f32 %v2189, %v1979
        %v2191 = vmul.f32 %v2189, %v1980
        %v2192 = vmul.f32 %v2189, %v1981
        %v2193 = vmul.f32 %v2189, %v1982
        %v2194 = vmul.f32 %v2189, %v1983
        %v2200 = vrot.slane %v2190, 1
        %v2201 = vrot.slane %v2191, 1
        %v2202 = vsel %vm604, %v2200, %v2201
        %v2203 = vrot.slane %v2192, 1
        %v2204 = vsel %vm604, %v2201, %v2203
        %v2205 = vrot.slane %v2193, 1
        %v2206 = vsel %vm604, %v2203, %v2205
        %v2207 = vrot.slane %v2194, 1
        %v2208 = vsel %vm604, %v2205, %v2207
        %v2213 = vadd.f32 %v2132, %v2202
        %v2214 = vadd.f32 %v2133, %v2204
        %v2215 = vadd.f32 %v2134, %v2206
        %v2216 = vadd.f32 %v2135, %v2208
        %v2217 = vstv %s294
        %v2218 = vmul.f32 %v2217, %v1979
        %v2219 = vmul.f32 %v2217, %v1980
        %v2220 = vmul.f32 %v2217, %v1981
        %v2221 = vmul.f32 %v2217, %v1982
        %v2222 = vmul.f32 %v2217, %v1983
        %v2228 = vrot.slane %v2218, 1
        %v2229 = vrot.slane %v2219, 1
        %v2230 = vsel %vm604, %v2228, %v2229
        %v2231 = vrot.slane %v2220, 1
        %v2232 = vsel %vm604, %v2229, %v2231
        %v2233 = vrot.slane %v2221, 1
        %v2234 = vsel %vm604, %v2231, %v2233
        %v2235 = vrot.slane %v2222, 1
        %v2236 = vsel %vm604, %v2233, %v2235
        %v2241 = vadd.f32 %v2157, %v2230
        %v2242 = vadd.f32 %v2158, %v2232
        %v2243 = vadd.f32 %v2159, %v2234
        %v2244 = vadd.f32 %v2160, %v2236
        %v2245 = vstv %s241
        %v2246 = vmul.f32 %v2245, %v1979
        %v2247 = vmul.f32 %v2245, %v1980
        %v2248 = vmul.f32 %v2245, %v1981
        %v2249 = vmul.f32 %v2245, %v1982
        %v2250 = vmul.f32 %v2245, %v1983
        %v2256 = vrot.slane %v2246, 1
        %v2257 = vrot.slane %v2247, 1
        %v2258 = vsel %vm604, %v2256, %v2257
        %v2259 = vrot.slane %v2248, 1
        %v2260 = vsel %vm604, %v2257, %v2259
        %v2261 = vrot.slane %v2249, 1
        %v2262 = vsel %vm604, %v2259, %v2261
        %v2263 = vrot.slane %v2250, 1
        %v2264 = vsel %vm604, %v2261, %v2263
        %2265 = vrot.lane.b32.xlu0 %v2258, 127
        %v2266 = vpop.permute.xlu0 %2265
        %2267 = vrot.lane.b32.xlu0 %v2260, 127
        %v2268 = vpop.permute.xlu0 %2267
        %2269 = vrot.lane.b32.xlu0 %v2262, 127
        %v2270 = vpop.permute.xlu0 %2269
        %2271 = vrot.lane.b32.xlu0 %v2264, 127
        %v2272 = vpop.permute.xlu0 %2271
        %v2277 = vadd.f32 %v2185, %v2266
        %v2278 = vadd.f32 %v2186, %v2268
        %v2279 = vadd.f32 %v2187, %v2270
        %v2280 = vadd.f32 %v2188, %v2272
        %v2281 = vstv %s268
        %v2282 = vmul.f32 %v2281, %v1979
        %v2283 = vmul.f32 %v2281, %v1980
        %v2284 = vmul.f32 %v2281, %v1981
        %v2285 = vmul.f32 %v2281, %v1982
        %v2286 = vmul.f32 %v2281, %v1983
        %v2292 = vrot.slane %v2282, 1
        %v2293 = vrot.slane %v2283, 1
        %v2294 = vsel %vm604, %v2292, %v2293
        %v2295 = vrot.slane %v2284, 1
        %v2296 = vsel %vm604, %v2293, %v2295
        %v2297 = vrot.slane %v2285, 1
        %v2298 = vsel %vm604, %v2295, %v2297
        %v2299 = vrot.slane %v2286, 1
        %v2300 = vsel %vm604, %v2297, %v2299
        %2301 = vrot.lane.b32.xlu0 %v2294, 127
        %v2302 = vpop.permute.xlu0 %2301
        %2303 = vrot.lane.b32.xlu0 %v2296, 127
        %v2304 = vpop.permute.xlu0 %2303
        %2305 = vrot.lane.b32.xlu0 %v2298, 127
        %v2306 = vpop.permute.xlu0 %2305
        %2307 = vrot.lane.b32.xlu0 %v2300, 127
        %v2308 = vpop.permute.xlu0 %2307
        %v2313 = vadd.f32 %v2213, %v2302
        %v2314 = vadd.f32 %v2214, %v2304
        %v2315 = vadd.f32 %v2215, %v2306
        %v2316 = vadd.f32 %v2216, %v2308
        %v2317 = vstv %s295
        %v2318 = vmul.f32 %v2317, %v1979
        %v2319 = vmul.f32 %v2317, %v1980
        %v2320 = vmul.f32 %v2317, %v1981
        %v2321 = vmul.f32 %v2317, %v1982
        %v2322 = vmul.f32 %v2317, %v1983
        %v2328 = vrot.slane %v2318, 1
        %v2329 = vrot.slane %v2319, 1
        %v2330 = vsel %vm604, %v2328, %v2329
        %v2331 = vrot.slane %v2320, 1
        %v2332 = vsel %vm604, %v2329, %v2331
        %v2333 = vrot.slane %v2321, 1
        %v2334 = vsel %vm604, %v2331, %v2333
        %v2335 = vrot.slane %v2322, 1
        %v2336 = vsel %vm604, %v2333, %v2335
        %2337 = vrot.lane.b32.xlu0 %v2330, 127
        %v2338 = vpop.permute.xlu0 %2337
        %2339 = vrot.lane.b32.xlu0 %v2332, 127
        %v2340 = vpop.permute.xlu0 %2339
        %2341 = vrot.lane.b32.xlu0 %v2334, 127
        %v2342 = vpop.permute.xlu0 %2341
        %2343 = vrot.lane.b32.xlu0 %v2336, 127
        %v2344 = vpop.permute.xlu0 %2343
        %v2349 = vadd.f32 %v2241, %v2338
        %v2350 = vadd.f32 %v2242, %v2340
        %v2351 = vadd.f32 %v2243, %v2342
        %v2352 = vadd.f32 %v2244, %v2344
        %v2353 = vstv %s242
        %v2354 = vmul.f32 %v2353, %v1979
        %v2355 = vmul.f32 %v2353, %v1980
        %v2356 = vmul.f32 %v2353, %v1981
        %v2357 = vmul.f32 %v2353, %v1982
        %v2358 = vmul.f32 %v2353, %v1983
        %v2364 = vrot.slane %v2354, 1
        %v2365 = vrot.slane %v2355, 1
        %v2366 = vsel %vm604, %v2364, %v2365
        %v2367 = vrot.slane %v2356, 1
        %v2368 = vsel %vm604, %v2365, %v2367
        %v2369 = vrot.slane %v2357, 1
        %v2370 = vsel %vm604, %v2367, %v2369
        %v2371 = vrot.slane %v2358, 1
        %v2372 = vsel %vm604, %v2369, %v2371
        %2373 = vrot.lane.b32.xlu0 %v2366, 126
        %v2374 = vpop.permute.xlu0 %2373
        %2375 = vrot.lane.b32.xlu0 %v2368, 126
        %v2376 = vpop.permute.xlu0 %2375
        %2377 = vrot.lane.b32.xlu0 %v2370, 126
        %v2378 = vpop.permute.xlu0 %2377
        %2379 = vrot.lane.b32.xlu0 %v2372, 126
        %v2380 = vpop.permute.xlu0 %2379
        %v2385 = vadd.f32 %v2277, %v2374
        %v2386 = vadd.f32 %v2278, %v2376
        %v2387 = vadd.f32 %v2279, %v2378
        %v2388 = vadd.f32 %v2280, %v2380
        %v2389 = vstv %s269
        %v2390 = vmul.f32 %v2389, %v1979
        %v2391 = vmul.f32 %v2389, %v1980
        %v2392 = vmul.f32 %v2389, %v1981
        %v2393 = vmul.f32 %v2389, %v1982
        %v2394 = vmul.f32 %v2389, %v1983
        %v2400 = vrot.slane %v2390, 1
        %v2401 = vrot.slane %v2391, 1
        %v2402 = vsel %vm604, %v2400, %v2401
        %v2403 = vrot.slane %v2392, 1
        %v2404 = vsel %vm604, %v2401, %v2403
        %v2405 = vrot.slane %v2393, 1
        %v2406 = vsel %vm604, %v2403, %v2405
        %v2407 = vrot.slane %v2394, 1
        %v2408 = vsel %vm604, %v2405, %v2407
        %2409 = vrot.lane.b32.xlu0 %v2402, 126
        %v2410 = vpop.permute.xlu0 %2409
        %2411 = vrot.lane.b32.xlu0 %v2404, 126
        %v2412 = vpop.permute.xlu0 %2411
        %2413 = vrot.lane.b32.xlu0 %v2406, 126
        %v2414 = vpop.permute.xlu0 %2413
        %2415 = vrot.lane.b32.xlu0 %v2408, 126
        %v2416 = vpop.permute.xlu0 %2415
        %v2421 = vadd.f32 %v2313, %v2410
        %v2422 = vadd.f32 %v2314, %v2412
        %v2423 = vadd.f32 %v2315, %v2414
        %v2424 = vadd.f32 %v2316, %v2416
        %v2425 = vstv %s296
        %v2426 = vmul.f32 %v2425, %v1979
        %v2427 = vmul.f32 %v2425, %v1980
        %v2428 = vmul.f32 %v2425, %v1981
        %v2429 = vmul.f32 %v2425, %v1982
        %v2430 = vmul.f32 %v2425, %v1983
        %v2436 = vrot.slane %v2426, 1
        %v2437 = vrot.slane %v2427, 1
        %v2438 = vsel %vm604, %v2436, %v2437
        %v2439 = vrot.slane %v2428, 1
        %v2440 = vsel %vm604, %v2437, %v2439
        %v2441 = vrot.slane %v2429, 1
        %v2442 = vsel %vm604, %v2439, %v2441
        %v2443 = vrot.slane %v2430, 1
        %v2444 = vsel %vm604, %v2441, %v2443
        %2445 = vrot.lane.b32.xlu0 %v2438, 126
        %v2446 = vpop.permute.xlu0 %2445
        %2447 = vrot.lane.b32.xlu0 %v2440, 126
        %v2448 = vpop.permute.xlu0 %2447
        %2449 = vrot.lane.b32.xlu0 %v2442, 126
        %v2450 = vpop.permute.xlu0 %2449
        %2451 = vrot.lane.b32.xlu0 %v2444, 126
        %v2452 = vpop.permute.xlu0 %2451
        %v2457 = vadd.f32 %v2349, %v2446
        %v2458 = vadd.f32 %v2350, %v2448
        %v2459 = vadd.f32 %v2351, %v2450
        %v2460 = vadd.f32 %v2352, %v2452
        %v2461 = vstv %s243
        %v2462 = vmul.f32 %v2461, %v1979
        %v2463 = vmul.f32 %v2461, %v1980
        %v2464 = vmul.f32 %v2461, %v1981
        %v2465 = vmul.f32 %v2461, %v1982
        %v2466 = vmul.f32 %v2461, %v1983
        %v2472 = vrot.slane %v2462, 2
        %v2473 = vrot.slane %v2463, 2
        %v2474 = vsel %vm905, %v2472, %v2473
        %v2475 = vrot.slane %v2464, 2
        %v2476 = vsel %vm905, %v2473, %v2475
        %v2477 = vrot.slane %v2465, 2
        %v2478 = vsel %vm905, %v2475, %v2477
        %v2479 = vrot.slane %v2466, 2
        %v2480 = vsel %vm905, %v2477, %v2479
        %v2485 = vadd.f32 %v2385, %v2474
        %v2486 = vadd.f32 %v2386, %v2476
        %v2487 = vadd.f32 %v2387, %v2478
        %v2488 = vadd.f32 %v2388, %v2480
        %v2489 = vstv %s270
        %v2490 = vmul.f32 %v2489, %v1979
        %v2491 = vmul.f32 %v2489, %v1980
        %v2492 = vmul.f32 %v2489, %v1981
        %v2493 = vmul.f32 %v2489, %v1982
        %v2494 = vmul.f32 %v2489, %v1983
        %v2500 = vrot.slane %v2490, 2
        %v2501 = vrot.slane %v2491, 2
        %v2502 = vsel %vm905, %v2500, %v2501
        %v2503 = vrot.slane %v2492, 2
        %v2504 = vsel %vm905, %v2501, %v2503
        %v2505 = vrot.slane %v2493, 2
        %v2506 = vsel %vm905, %v2503, %v2505
        %v2507 = vrot.slane %v2494, 2
        %v2508 = vsel %vm905, %v2505, %v2507
        %v2513 = vadd.f32 %v2421, %v2502
        %v2514 = vadd.f32 %v2422, %v2504
        %v2515 = vadd.f32 %v2423, %v2506
        %v2516 = vadd.f32 %v2424, %v2508
        %v2517 = vstv %s297
        %v2518 = vmul.f32 %v2517, %v1979
        %v2519 = vmul.f32 %v2517, %v1980
        %v2520 = vmul.f32 %v2517, %v1981
        %v2521 = vmul.f32 %v2517, %v1982
        %v2522 = vmul.f32 %v2517, %v1983
        %v2528 = vrot.slane %v2518, 2
        %v2529 = vrot.slane %v2519, 2
        %v2530 = vsel %vm905, %v2528, %v2529
        %v2531 = vrot.slane %v2520, 2
        %v2532 = vsel %vm905, %v2529, %v2531
        %v2533 = vrot.slane %v2521, 2
        %v2534 = vsel %vm905, %v2531, %v2533
        %v2535 = vrot.slane %v2522, 2
        %v2536 = vsel %vm905, %v2533, %v2535
        %v2541 = vadd.f32 %v2457, %v2530
        %v2542 = vadd.f32 %v2458, %v2532
        %v2543 = vadd.f32 %v2459, %v2534
        %v2544 = vadd.f32 %v2460, %v2536
        %v2545 = vstv %s244
        %v2546 = vmul.f32 %v2545, %v1979
        %v2547 = vmul.f32 %v2545, %v1980
        %v2548 = vmul.f32 %v2545, %v1981
        %v2549 = vmul.f32 %v2545, %v1982
        %v2550 = vmul.f32 %v2545, %v1983
        %v2556 = vrot.slane %v2546, 2
        %v2557 = vrot.slane %v2547, 2
        %v2558 = vsel %vm905, %v2556, %v2557
        %v2559 = vrot.slane %v2548, 2
        %v2560 = vsel %vm905, %v2557, %v2559
        %v2561 = vrot.slane %v2549, 2
        %v2562 = vsel %vm905, %v2559, %v2561
        %v2563 = vrot.slane %v2550, 2
        %v2564 = vsel %vm905, %v2561, %v2563
        %2565 = vrot.lane.b32.xlu0 %v2558, 127
        %v2566 = vpop.permute.xlu0 %2565
        %2567 = vrot.lane.b32.xlu0 %v2560, 127
        %v2568 = vpop.permute.xlu0 %2567
        %2569 = vrot.lane.b32.xlu0 %v2562, 127
        %v2570 = vpop.permute.xlu0 %2569
        %2571 = vrot.lane.b32.xlu0 %v2564, 127
        %v2572 = vpop.permute.xlu0 %2571
        %v2577 = vadd.f32 %v2485, %v2566
        %v2578 = vadd.f32 %v2486, %v2568
        %v2579 = vadd.f32 %v2487, %v2570
        %v2580 = vadd.f32 %v2488, %v2572
        %v2581 = vstv %s271
        %v2582 = vmul.f32 %v2581, %v1979
        %v2583 = vmul.f32 %v2581, %v1980
        %v2584 = vmul.f32 %v2581, %v1981
        %v2585 = vmul.f32 %v2581, %v1982
        %v2586 = vmul.f32 %v2581, %v1983
        %v2592 = vrot.slane %v2582, 2
        %v2593 = vrot.slane %v2583, 2
        %v2594 = vsel %vm905, %v2592, %v2593
        %v2595 = vrot.slane %v2584, 2
        %v2596 = vsel %vm905, %v2593, %v2595
        %v2597 = vrot.slane %v2585, 2
        %v2598 = vsel %vm905, %v2595, %v2597
        %v2599 = vrot.slane %v2586, 2
        %v2600 = vsel %vm905, %v2597, %v2599
        %2601 = vrot.lane.b32.xlu0 %v2594, 127
        %v2602 = vpop.permute.xlu0 %2601
        %2603 = vrot.lane.b32.xlu0 %v2596, 127
        %v2604 = vpop.permute.xlu0 %2603
        %2605 = vrot.lane.b32.xlu0 %v2598, 127
        %v2606 = vpop.permute.xlu0 %2605
        %2607 = vrot.lane.b32.xlu0 %v2600, 127
        %v2608 = vpop.permute.xlu0 %2607
        %v2613 = vadd.f32 %v2513, %v2602
        %v2614 = vadd.f32 %v2514, %v2604
        %v2615 = vadd.f32 %v2515, %v2606
        %v2616 = vadd.f32 %v2516, %v2608
        %v2617 = vstv %s298
        %v2618 = vmul.f32 %v2617, %v1979
        %v2619 = vmul.f32 %v2617, %v1980
        %v2620 = vmul.f32 %v2617, %v1981
        %v2621 = vmul.f32 %v2617, %v1982
        %v2622 = vmul.f32 %v2617, %v1983
        %v2628 = vrot.slane %v2618, 2
        %v2629 = vrot.slane %v2619, 2
        %v2630 = vsel %vm905, %v2628, %v2629
        %v2631 = vrot.slane %v2620, 2
        %v2632 = vsel %vm905, %v2629, %v2631
        %v2633 = vrot.slane %v2621, 2
        %v2634 = vsel %vm905, %v2631, %v2633
        %v2635 = vrot.slane %v2622, 2
        %v2636 = vsel %vm905, %v2633, %v2635
        %2637 = vrot.lane.b32.xlu0 %v2630, 127
        %v2638 = vpop.permute.xlu0 %2637
        %2639 = vrot.lane.b32.xlu0 %v2632, 127
        %v2640 = vpop.permute.xlu0 %2639
        %2641 = vrot.lane.b32.xlu0 %v2634, 127
        %v2642 = vpop.permute.xlu0 %2641
        %2643 = vrot.lane.b32.xlu0 %v2636, 127
        %v2644 = vpop.permute.xlu0 %2643
        %v2649 = vadd.f32 %v2541, %v2638
        %v2650 = vadd.f32 %v2542, %v2640
        %v2651 = vadd.f32 %v2543, %v2642
        %v2652 = vadd.f32 %v2544, %v2644
        %v2653 = vstv %s245
        %v2654 = vmul.f32 %v2653, %v1979
        %v2655 = vmul.f32 %v2653, %v1980
        %v2656 = vmul.f32 %v2653, %v1981
        %v2657 = vmul.f32 %v2653, %v1982
        %v2658 = vmul.f32 %v2653, %v1983
        %v2664 = vrot.slane %v2654, 2
        %v2665 = vrot.slane %v2655, 2
        %v2666 = vsel %vm905, %v2664, %v2665
        %v2667 = vrot.slane %v2656, 2
        %v2668 = vsel %vm905, %v2665, %v2667
        %v2669 = vrot.slane %v2657, 2
        %v2670 = vsel %vm905, %v2667, %v2669
        %v2671 = vrot.slane %v2658, 2
        %v2672 = vsel %vm905, %v2669, %v2671
        %2673 = vrot.lane.b32.xlu0 %v2666, 126
        %v2674 = vpop.permute.xlu0 %2673
        %2675 = vrot.lane.b32.xlu0 %v2668, 126
        %v2676 = vpop.permute.xlu0 %2675
        %2677 = vrot.lane.b32.xlu0 %v2670, 126
        %v2678 = vpop.permute.xlu0 %2677
        %2679 = vrot.lane.b32.xlu0 %v2672, 126
        %v2680 = vpop.permute.xlu0 %2679
        %v2685 = vadd.f32 %v2577, %v2674
        %v2686 = vadd.f32 %v2578, %v2676
        %v2687 = vadd.f32 %v2579, %v2678
        %v2688 = vadd.f32 %v2580, %v2680
        %v2689 = vstv %s272
        %v2690 = vmul.f32 %v2689, %v1979
        %v2691 = vmul.f32 %v2689, %v1980
        %v2692 = vmul.f32 %v2689, %v1981
        %v2693 = vmul.f32 %v2689, %v1982
        %v2694 = vmul.f32 %v2689, %v1983
        %v2700 = vrot.slane %v2690, 2
        %v2701 = vrot.slane %v2691, 2
        %v2702 = vsel %vm905, %v2700, %v2701
        %v2703 = vrot.slane %v2692, 2
        %v2704 = vsel %vm905, %v2701, %v2703
        %v2705 = vrot.slane %v2693, 2
        %v2706 = vsel %vm905, %v2703, %v2705
        %v2707 = vrot.slane %v2694, 2
        %v2708 = vsel %vm905, %v2705, %v2707
        %2709 = vrot.lane.b32.xlu0 %v2702, 126
        %v2710 = vpop.permute.xlu0 %2709
        %2711 = vrot.lane.b32.xlu0 %v2704, 126
        %v2712 = vpop.permute.xlu0 %2711
        %2713 = vrot.lane.b32.xlu0 %v2706, 126
        %v2714 = vpop.permute.xlu0 %2713
        %2715 = vrot.lane.b32.xlu0 %v2708, 126
        %v2716 = vpop.permute.xlu0 %2715
        %v2721 = vadd.f32 %v2613, %v2710
        %v2722 = vadd.f32 %v2614, %v2712
        %v2723 = vadd.f32 %v2615, %v2714
        %v2724 = vadd.f32 %v2616, %v2716
        %v2725 = vstv %s299
        %v2726 = vmul.f32 %v2725, %v1979
        %v2727 = vmul.f32 %v2725, %v1980
        %v2728 = vmul.f32 %v2725, %v1981
        %v2729 = vmul.f32 %v2725, %v1982
        %v2730 = vmul.f32 %v2725, %v1983
        %v2736 = vrot.slane %v2726, 2
        %v2737 = vrot.slane %v2727, 2
        %v2738 = vsel %vm905, %v2736, %v2737
        %v2739 = vrot.slane %v2728, 2
        %v2740 = vsel %vm905, %v2737, %v2739
        %v2741 = vrot.slane %v2729, 2
        %v2742 = vsel %vm905, %v2739, %v2741
        %v2743 = vrot.slane %v2730, 2
        %v2744 = vsel %vm905, %v2741, %v2743
        %2745 = vrot.lane.b32.xlu0 %v2738, 126
        %v2746 = vpop.permute.xlu0 %2745
        %2747 = vrot.lane.b32.xlu0 %v2740, 126
        %v2748 = vpop.permute.xlu0 %2747
        %2749 = vrot.lane.b32.xlu0 %v2742, 126
        %v2750 = vpop.permute.xlu0 %2749
        %2751 = vrot.lane.b32.xlu0 %v2744, 126
        %v2752 = vpop.permute.xlu0 %2751
        %v2757 = vadd.f32 %v2649, %v2746
        %v2758 = vadd.f32 %v2650, %v2748
        %v2759 = vadd.f32 %v2651, %v2750
        %v2760 = vadd.f32 %v2652, %v2752
        %vm2761 = vcmask 261120
        %2762 = vst.msk [vmem:[%s215] sm:$0xff] %vm2761, %v2685
        %2763 = vst.msk [vmem:[%s215 + $0x8] sm:$0xff] %vm2761, %v2686
        %2764 = vst.msk [vmem:[%s215 + $0x10] sm:$0xff] %vm2761, %v2687
        %2765 = vst.msk [vmem:[%s215 + $0x18] sm:$0xff] %vm2761, %v2688
        %s2766 = scalar_lea.vmem %s215, 32 [#allocation10]
        %2767 = vst.msk [vmem:[%s2766] sm:$0xff] %vm2761, %v2721
        %2768 = vst.msk [vmem:[%s2766 + $0x8] sm:$0xff] %vm2761, %v2722
        %2769 = vst.msk [vmem:[%s2766 + $0x10] sm:$0xff] %vm2761, %v2723
        %2770 = vst.msk [vmem:[%s2766 + $0x18] sm:$0xff] %vm2761, %v2724
        %s2771 = scalar_lea.vmem %s215, 64 [#allocation10]
        %2772 = vst.msk [vmem:[%s2771] sm:$0xff] %vm2761, %v2757
        %2773 = vst.msk [vmem:[%s2771 + $0x8] sm:$0xff] %vm2761, %v2758
        %2774 = vst.msk [vmem:[%s2771 + $0x10] sm:$0xff] %vm2761, %v2759
        %2775 = vst.msk [vmem:[%s2771 + $0x18] sm:$0xff] %vm2761, %v2760
        %v2776 = vmax.f32 %v2723, 0.0
        %v2777 = vmax.f32 %v2724, 0.0
        %v2778 = vsel %vm317, %v2776, %v2723
        %v2779 = vsel %vm317, %v2777, %v2724
        %2780 = vst.msk [vmem:[%s2766 + $0x10] sm:$0xff] %vm2761, %v2778
        %vm2781 = vcmask 253952
        %2782 = vst.msk [vmem:[%s2766 + $0x18] sm:$0x1] %vm2781, %v2779
        %s2783 = sand.u32 %s98, 1
        %s2784 = scalar_lea.sflag [#allocation5], %s2783
        %s2785 = sand.u32 %s98, 1
        %s2786 = smul.addr %s2785, 96
        %s2787 = scalar_lea.vmem [#allocation10], %s2786
        // Predicated region
        $region45: #{tpu_custom_call.1} parent=31 // pred_check
          %p2788 = pneg %p108
        $region46: #{tpu_custom_call.1} parent=31 // pred_check_branch
          %2790 = sbr.rel (%p2788) target = $region48
        $region47: #{tpu_custom_call.1} parent=31 // pred_region
          %s2792 = ssub.s32 1536, 1536
          %2793 = vsyncadd %s2784, %s2792
          %s2794 = smul.addr %s22, 12
          %s2795 = smul.addr %s2794, 128
          %s2796 = scalar_lea.hbm %s3, %s2795
          %s2797 = sshll.u32 %s2787, 4
          %s2798 = int_to_ptr.vmem [resolvable:$true] %s2797
          %2803 = dma.vmem_to_hbm [thread:$0]  %s2798, 1536, %s2796, %s2784, 128, 128, 8
        $region48: #{tpu_custom_call.1} parent=31 // pred_fallthru
          _
      $region32: #{tpu_custom_call.1} parent=5 // pred_fallthru
        _
      %p2804 = scmp.le.s32.totalorder 2, %s17
      // Predicated region
      $region49: #{tpu_custom_call.1} parent=5 // pred_check
        %p2805 = pneg %p2804
      $region50: #{tpu_custom_call.1} parent=5 // pred_check_branch
        %2807 = sbr.rel (%p2805) target = $region52
      $region51: #{tpu_custom_call.1} parent=5 // pred_region
        %s2808 = ssub.s32 %s17, 2
        // Predicated region
        $region53: #{tpu_custom_call.1} parent=51 // pred_check
          %p2809 = pneg %p114
        $region54: #{tpu_custom_call.1} parent=51 // pred_check_branch
          %2811 = sbr.rel (%p2809) target = $region56
        $region55: #{tpu_custom_call.1} parent=51 // pred_region
          %s2812 = sand.u32 %s99, 1
          %s2813 = scalar_lea.sflag [#allocation5], %s2812
          %s2814 = sand.u32 %s99, 1
          %s2815 = smul.addr %s2814, 96
          %s2816 = scalar_lea.vmem [#allocation10], %s2815
          %2817 = dma.done %s2813, 1536
        $region56: #{tpu_custom_call.1} parent=51 // pred_fallthru
          _
      $region52: #{tpu_custom_call.1} parent=5 // pred_fallthru
        _
    $region6: #{tpu_custom_call.1} parent=1 // loop_footer
      %s21 = sadd.s32 1, %s17
    $region7: #{tpu_custom_call.1} parent=1 // loop_footer_branch
      %16 = sbr.rel target = $region3
    $region8: #{tpu_custom_call.1} parent=1 // loop_exit
      _
    %2818 = vsyncpa [#allocation4], 1
    %s2819 = scalar_lea.sflag [#allocation4], 1
    %2820 = vsyncpa %s2819, 1
    %2821 = vsyncpa [#allocation5], 1
    %s2822 = scalar_lea.sflag [#allocation5], 1
    %2823 = vsyncpa %s2822, 1
    %2824 = vsyncpa [#allocation6], 1
    %s2825 = scalar_lea.sflag [#allocation6], 1
    %2826 = vsyncpa %s2825, 1
    %2827 = vsyncpa [#allocation9], 1

</llo_original>
